<compile_context>
chip_gen: v7x
topology: tpu7x:2x2x1
jax: 0.10.0
libtpu: 0.0.40
codegen_flags: <defaults>
</compile_context>

<pallas_src>
import jax
import jax.numpy as jnp
from jax.experimental import pallas as pl
from jax.experimental.pallas import tpu as pltpu

# ----- module-level hyperparameters (globals in the PyTorch source) -----
EMBED_SIZE = 16
TAG_EMBED_SIZE = 8
HIDDEN_SIZE = 32
NUM_DIRS = 2
NUM_LAYERS = 1
BIDIRECTIONAL = True
DROPOUT = 0.0
MAX_SEQ_LEN = 6
USE_SE = True
PAD_IDX = 0
SEQ_LENGTH = MAX_SEQ_LEN + 2 if USE_SE else MAX_SEQ_LEN + 1      # 8
LSTM_IN = EMBED_SIZE + TAG_EMBED_SIZE + 1                        # 25
HID_DIR = HIDDEN_SIZE // NUM_DIRS                                # 16
GATES = 4 * HID_DIR                                              # 64 per direction
Y_WIDTH = SEQ_LENGTH * TAG_EMBED_SIZE                            # 64

# combined 128-lane gate layout (both directions):
#   lanes [ 0: 32] = i  (fwd 0:16 | bwd 16:32)
#   lanes [32: 64] = f
#   lanes [64: 96] = o         -> one contiguous 96-lane sigmoid
#   lanes [96:128] = g         -> one contiguous 32-lane tanh


def _leaky(x, slope=0.2):
    return jnp.where(x > 0, x, slope * x)


def discriminator_kernel(embed_ref, mask_ref, omask_ref, ymask_ref,
                         wih_ref, whh_ref, w1_ref, w2_ref, w3_ref, b_ref,
                         out_ref, hseq_ref):
    T, Bb, D = embed_ref.shape
    H = HID_DIR

    # ---- hoisted input projection (one lane-dense matmul, bias folded in) ----
    x_all = embed_ref[...].reshape(T * Bb, D)                           # (T*B, 26)
    gx = jnp.dot(x_all, wih_ref[...],
                 preferred_element_type=jnp.float32)                    # (T*B, 128)

    whh = whh_ref[...]                                                  # (32, 128)

    # lanes belonging to the forward direction: (lane % 32) < 16
    lane = jax.lax.broadcasted_iota(jnp.int32, (1, 2 * GATES), 1)
    fwd_lane = (lane % (2 * H)) < H                                     # (1, 128)

    h = jnp.zeros((Bb, HIDDEN_SIZE), jnp.float32)                       # [h_f | h_b]
    c = jnp.zeros((Bb, HIDDEN_SIZE), jnp.float32)

    # ---- fully unrolled recurrence, both directions in one gate tensor ----
    for k in range(T):
        tf = k
        tb = T - 1 - k

        gx_f = gx[tf * Bb:(tf + 1) * Bb]                                # (B, 128)
        gx_b = gx[tb * Bb:(tb + 1) * Bb]
        gxk = gx_f if tf == tb else jnp.where(fwd_lane, gx_f, gx_b)

        g = gxk + jnp.dot(h, whh, preferred_element_type=jnp.float32)   # (B, 128)

        s = jax.nn.sigmoid(g[:, 0:3 * HIDDEN_SIZE])      # i|f|o, both dirs (96 lanes)
        gg = jnp.tanh(g[:, 3 * HIDDEN_SIZE:])            # g,     both dirs (32 lanes)
        i_all = s[:, 0:HIDDEN_SIZE]
        f_all = s[:, HIDDEN_SIZE:2 * HIDDEN_SIZE]
        o_all = s[:, 2 * HIDDEN_SIZE:3 * HIDDEN_SIZE]

        c_new = f_all * c + i_all * gg
        h_new = o_all * jnp.tanh(c_new)

        # packed-sequence semantics: freeze state past each item's length
        m = mask_ref[k]                                                  # (B, 32)
        c = c + m * (c_new - c)
        h = h + m * (h_new - h)

        # store per-timestep outputs into scratch (fwd half at tf, bwd half at tb)
        hseq_ref[:, tf * HIDDEN_SIZE:tf * HIDDEN_SIZE + H] = h[:, 0:H]
        hseq_ref[:, tb * HIDDEN_SIZE + H:(tb + 1) * HIDDEN_SIZE] = h[:, H:]

    # ---- out1 fused over all timesteps via block-diagonal W1 ----
    h_all = hseq_ref[...] * omask_ref[...]                 # zero outputs past length
    y = _leaky(jnp.dot(h_all, w1_ref[...], preferred_element_type=jnp.float32)
               + b_ref[0:1, 0:Y_WIDTH])                                  # (B, 64)
    y = y * ymask_ref[...]          # columns beyond max(lengths)*8 are the zero-pad

    # ---- out2 ----
    z1 = _leaky(jnp.dot(y, w2_ref[...], preferred_element_type=jnp.float32)
                + b_ref[1:2, :])                                         # (B, 256)
    z2 = _leaky(jnp.dot(z1, w3_ref[...], preferred_element_type=jnp.float32)
                + b_ref[2:3, 0:HIDDEN_SIZE])                             # (B, 32)
    # final Linear(32 -> 1): VPU multiply + lane reduce (w4/b4 packed in b_ref row 3)
    w4row = b_ref[3:4, 0:HIDDEN_SIZE]                                    # (1, 32)
    b4 = b_ref[3:4, HIDDEN_SIZE:HIDDEN_SIZE + 1]                         # (1, 1)
    z3 = jax.nn.sigmoid(jnp.sum(z2 * w4row, axis=1, keepdims=True) + b4)
    out_ref[...] = z3


def init_params(key, vocab_size, num_tags):
    ks = jax.random.split(key, 16)

    def rnd(k, shape, scale=0.1):
        return jax.random.normal(k, shape, jnp.float32) * scale

    embed_word = rnd(ks[0], (vocab_size, EMBED_SIZE)).at[PAD_IDX].set(0.0)
    embed_tag = rnd(ks[1], (num_tags, TAG_EMBED_SIZE)).at[PAD_IDX].set(0.0)
    return dict(
        embed_word=embed_word,
        embed_tag=embed_tag,
        # LSTM (PyTorch gate order i, f, g, o), stored input-major for x @ W.
        # b_f / b_b correspond to (b_ih + b_hh) summed when porting checkpoints.
        wih_f=rnd(ks[2], (LSTM_IN, GATES)),
        whh_f=rnd(ks[3], (HID_DIR, GATES)),
        b_f=rnd(ks[4], (1, GATES)),
        wih_b=rnd(ks[5], (LSTM_IN, GATES)),
        whh_b=rnd(ks[6], (HID_DIR, GATES)),
        b_b=rnd(ks[7], (1, GATES)),
        # out1: Linear(32 -> 8)
        w1=rnd(ks[8], (HIDDEN_SIZE, TAG_EMBED_SIZE)),
        b1=rnd(ks[9], (1, TAG_EMBED_SIZE)),
        # out2: Linear(64 -> 256) stored as (SEQ_LENGTH, TAG_EMBED, 256)
        w2=rnd(ks[10], (SEQ_LENGTH, TAG_EMBED_SIZE, 256)),
        b2=rnd(ks[11], (1, 256)),
        w3=rnd(ks[12], (256, 32)),
        b3=rnd(ks[13], (1, 32)),
        w4=rnd(ks[14], (32, 1)),
        b4=rnd(ks[15], (1, 1)),
    )


def pack_params(params, T):
    """Pack the natural-shape tensors into lane-dense kernel inputs (done once)."""
    assert T * TAG_EMBED_SIZE <= Y_WIDTH
    H = HID_DIR

    def scatter_dir(w, d):
        # map one direction's [i|f|g|o] (PyTorch order, 64 cols) into the combined
        # 128-lane layout [i_f i_b | f_f f_b | o_f o_b | g_f g_b]
        i, f, g, o = jnp.split(w, 4, axis=-1)
        out = jnp.zeros(w.shape[:-1] + (2 * GATES,), jnp.float32)
        base = d * H
        out = out.at[..., 0 * HIDDEN_SIZE + base:0 * HIDDEN_SIZE + base + H].set(i)
        out = out.at[..., 1 * HIDDEN_SIZE + base:1 * HIDDEN_SIZE + base + H].set(f)
        out = out.at[..., 2 * HIDDEN_SIZE + base:2 * HIDDEN_SIZE + base + H].set(o)
        out = out.at[..., 3 * HIDDEN_SIZE + base:3 * HIDDEN_SIZE + base + H].set(g)
        return out

    # (26, 128): [W_ih both dirs, combined gate layout] + bias as an extra row
    wih_comb = jnp.concatenate([
        scatter_dir(params['wih_f'], 0) + scatter_dir(params['wih_b'], 1),
        scatter_dir(params['b_f'], 0) + scatter_dir(params['b_b'], 1)], axis=0)

    # (32, 128): rows 0:16 = h_f -> fwd lanes only, rows 16:32 = h_b -> bwd lanes only
    whh_comb = jnp.concatenate([
        scatter_dir(params['whh_f'], 0),
        scatter_dir(params['whh_b'], 1)], axis=0)

    # (T*32, 64) block-diagonal out1 weight (zero columns beyond T*8)
    w1 = params['w1']
    w1_bd = jnp.zeros((T * HIDDEN_SIZE, Y_WIDTH), jnp.float32)
    for t in range(T):
        w1_bd = w1_bd.at[t * HIDDEN_SIZE:(t + 1) * HIDDEN_SIZE,
                         t * TAG_EMBED_SIZE:(t + 1) * TAG_EMBED_SIZE].set(w1)

    # bias bundle (4, 256):
    #   row0 = tiled b1 (+zero pad), row1 = b2, row2 = b3 (+pad),
    #   row3 = [ w4^T (32 lanes) | b4 (lane 32) | zeros ]
    b1_row = jnp.zeros((1, 256), jnp.float32).at[:, 0:T * TAG_EMBED_SIZE].set(
        jnp.tile(params['b1'], (1, T)))
    b2_row = params['b2']
    b3_row = jnp.zeros((1, 256), jnp.float32).at[:, 0:HIDDEN_SIZE].set(params['b3'])
    w4b_row = (jnp.zeros((1, 256), jnp.float32)
               .at[:, 0:HIDDEN_SIZE].set(params['w4'].reshape(1, HIDDEN_SIZE))
               .at[:, HIDDEN_SIZE:HIDDEN_SIZE + 1].set(params['b4']))
    biases = jnp.concatenate([b1_row, b2_row, b3_row, w4b_row], axis=0)

    return dict(
        embed_word=params['embed_word'],
        embed_tag=params['embed_tag'],
        wih_comb=wih_comb,
        whh_comb=whh_comb,
        w1_bd=w1_bd,
        w2t=params['w2'].reshape(Y_WIDTH, 256),
        w3=params['w3'],
        biases=biases,
    )


@jax.jit
def discriminator_forward(x, f, tags, packed):
    B, T = x.shape
    D = LSTM_IN + 1                                                     # 26 (bias column)
    assert packed['w1_bd'].shape[0] == T * HIDDEN_SIZE  # pack_params(T) must match

    lengths = (x > 0).sum(axis=1).astype(jnp.int32)                     # (B,)

    # glue (XLA): embedding gathers + feature concat + ones column for folded bias
    embed_w = packed['embed_word'][x]                                   # (B, T, 16)
    embed_t = packed['embed_tag'][tags]                                 # (B, T, 8)
    f1 = f[:, 0, :].astype(jnp.float32)[..., None]                      # (B, T, 1)
    ones = jnp.ones((B, T, 1), jnp.float32)
    embed = jnp.concatenate([embed_w, embed_t, f1, ones], axis=2)       # (B, T, 26)
    embed = jnp.transpose(embed, (1, 0, 2))                             # (T, B, 26)

    # lane-replicated freeze mask: step k -> fwd half uses t=k, bwd half uses t=T-1-k
    pos = jnp.arange(T, dtype=jnp.int32)
    valid = (pos[None, :] < lengths[:, None]).astype(jnp.float32)       # (B, T)
    vf = valid.T                                                        # (T, B)
    vb = jnp.flip(vf, axis=0)
    freeze = jnp.concatenate(
        [jnp.broadcast_to(vf[:, :, None], (T, B, HID_DIR)),
         jnp.broadcast_to(vb[:, :, None], (T, B, HID_DIR))], axis=2)    # (T, B, 32)

    # packed-sequence output mask, applied once before W1
    outmask = jnp.repeat(valid, HIDDEN_SIZE, axis=1)                    # (B, T*32)

    # pad_packed pads to max(lengths); zero y columns beyond it (then up to 64)
    max_len = jnp.max(lengths)
    col_t = jnp.arange(Y_WIDTH, dtype=jnp.int32) // TAG_EMBED_SIZE
    ymask = (col_t < max_len).astype(jnp.float32)[None, :]              # (1, 64)

    # batch blocking: sublane-multiple pad; >=2 parallel blocks for huge batches
    # (v7x megacore), single block for small ones
    if B <= 128:
        BB = max(8, -(-B // 8) * 8)
    else:
        BB = -(-min(512, -(-B // 2)) // 8) * 8
    B_pad = -(-B // BB) * BB
    if B_pad > B:
        pb = B_pad - B
        embed = jnp.pad(embed, ((0, 0), (0, pb), (0, 0)))
        freeze = jnp.pad(freeze, ((0, 0), (0, pb), (0, 0)))
        outmask = jnp.pad(outmask, ((0, pb), (0, 0)))
    grid = (B_pad // BB,)

    out = pl.pallas_call(
        discriminator_kernel,
        out_shape=jax.ShapeDtypeStruct((B_pad, 1), jnp.float32),
        grid=grid,
        in_specs=[
            pl.BlockSpec((T, BB, D), lambda i: (0, i, 0)),              # embed
            pl.BlockSpec((T, BB, HIDDEN_SIZE), lambda i: (0, i, 0)),    # freeze mask
            pl.BlockSpec((BB, T * HIDDEN_SIZE), lambda i: (i, 0)),      # output mask
            pl.BlockSpec((1, Y_WIDTH), lambda i: (0, 0)),               # y pad mask
            pl.BlockSpec((D, 2 * GATES), lambda i: (0, 0)),             # wih_comb
            pl.BlockSpec((HIDDEN_SIZE, 2 * GATES), lambda i: (0, 0)),   # whh_comb
            pl.BlockSpec((T * HIDDEN_SIZE, Y_WIDTH), lambda i: (0, 0)),  # w1_bd
            pl.BlockSpec((Y_WIDTH, 256), lambda i: (0, 0)),             # w2t
            pl.BlockSpec((256, HIDDEN_SIZE), lambda i: (0, 0)),         # w3
            pl.BlockSpec((4, 256), lambda i: (0, 0)),                   # biases (+w4,b4)
        ],
        out_specs=pl.BlockSpec((BB, 1), lambda i: (i, 0)),
        scratch_shapes=[pltpu.VMEM((BB, T * HIDDEN_SIZE), jnp.float32)],
        compiler_params=pltpu.CompilerParams(
            dimension_semantics=("parallel",)),
    )(embed, freeze, outmask, ymask,
      packed['wih_comb'], packed['whh_comb'], packed['w1_bd'],
      packed['w2t'], packed['w3'], packed['biases'])
    return out[:B]


if __name__ == "__main__":
    key = jax.random.PRNGKey(0)
    kp, kx, kt, kf = jax.random.split(key, 4)

    vocab_size, num_tags = 50, 10
    B, T = 8, MAX_SEQ_LEN                                               # (8, 6)

    params = init_params(kp, vocab_size, num_tags)
    packed = pack_params(params, T)

    # deterministic, length-sorted (pack_padded requires descending lengths)
    seq_lens = jnp.array([6, 6, 5, 5, 4, 4, 3, 2], jnp.int32)
    pos = jnp.arange(T)[None, :]
    valid = pos < seq_lens[:, None]

    x = jax.random.randint(kx, (B, T), 1, vocab_size)
    tags = jax.random.randint(kt, (B, T), 1, num_tags)
    x = jnp.where(valid, x, 0).astype(jnp.int32)
    tags = jnp.where(valid, tags, 0).astype(jnp.int32)
    f = jax.random.normal(kf, (B, 2, T), jnp.float32)

    out = discriminator_forward(x, f, tags, packed)
    jax.block_until_ready(out)
    assert out.shape == (B, 1)
    assert bool(jnp.all(jnp.isfinite(out)))
    assert bool(jnp.all((out >= 0.0) & (out <= 1.0)))
    print("KERNEL_OK")
</pallas_src>

<mosaic_0001>
module attributes {stable_mosaic.version = 11 : i64} {
  func.func @discriminator_kernel(%arg0: i32, %arg1: memref<6x8x26xf32, #tpu.memory_space<vmem>>, %arg2: memref<6x8x32xf32, #tpu.memory_space<vmem>>, %arg3: memref<8x192xf32, #tpu.memory_space<vmem>>, %arg4: memref<1x64xf32, #tpu.memory_space<vmem>>, %arg5: memref<26x128xf32, #tpu.memory_space<vmem>>, %arg6: memref<32x128xf32, #tpu.memory_space<vmem>>, %arg7: memref<192x64xf32, #tpu.memory_space<vmem>>, %arg8: memref<64x256xf32, #tpu.memory_space<vmem>>, %arg9: memref<256x32xf32, #tpu.memory_space<vmem>>, %arg10: memref<4x256xf32, #tpu.memory_space<vmem>>, %arg11: memref<8x1xf32, #tpu.memory_space<vmem>>, %arg12: memref<8x192xf32, #tpu.memory_space<vmem>>) attributes {dimension_semantics = [#tpu.dimension_semantics<parallel>], iteration_bounds = array<i64: 1>, scalar_prefetch = 0 : i64, scratch_operands = 1 : i64, tpu.core_type = #tpu.core_type<tc>, window_params = [{transform_indices = @transform_0, window_bounds = array<i64: 6, 8, 26>}, {transform_indices = @transform_1, window_bounds = array<i64: 6, 8, 32>}, {transform_indices = @transform_2, window_bounds = array<i64: 8, 192>}, {pipeline_mode = #tpu.pipeline_mode<synchronous>, transform_indices = @transform_3, window_bounds = array<i64: 1, 64>}, {pipeline_mode = #tpu.pipeline_mode<synchronous>, transform_indices = @transform_4, window_bounds = array<i64: 26, 128>}, {pipeline_mode = #tpu.pipeline_mode<synchronous>, transform_indices = @transform_5, window_bounds = array<i64: 32, 128>}, {pipeline_mode = #tpu.pipeline_mode<synchronous>, transform_indices = @transform_6, window_bounds = array<i64: 192, 64>}, {pipeline_mode = #tpu.pipeline_mode<synchronous>, transform_indices = @transform_7, window_bounds = array<i64: 64, 256>}, {pipeline_mode = #tpu.pipeline_mode<synchronous>, transform_indices = @transform_8, window_bounds = array<i64: 256, 32>}, {pipeline_mode = #tpu.pipeline_mode<synchronous>, transform_indices = @transform_9, window_bounds = array<i64: 4, 256>}, {transform_indices = @transform_10, window_bounds = array<i64: 8, 1>}]} {
    %c0 = arith.constant 0 : index
    %c0_0 = arith.constant 0 : index
    %c0_1 = arith.constant 0 : index
    %0 = vector.load %arg1[%c0, %c0_0, %c0_1] : memref<6x8x26xf32, #tpu.memory_space<vmem>>, vector<6x8x26xf32>
    %1 = vector.shape_cast %0 : vector<6x8x26xf32> to vector<48x26xf32>
    %c0_2 = arith.constant 0 : index
    %c0_3 = arith.constant 0 : index
    %2 = vector.load %arg5[%c0_2, %c0_3] : memref<26x128xf32, #tpu.memory_space<vmem>>, vector<26x128xf32>
    %cst = arith.constant dense<0.000000e+00> : vector<48x128xf32>
    %3 = tpu.matmul %1, %2, %cst {dimension_numbers = #tpu.dot_dimension_numbers<[1], [0], [0], [1], [0, 0, 1, 1], [], []>} : vector<48x26xf32>, vector<26x128xf32>, vector<48x128xf32> -> vector<48x128xf32>
    %c0_4 = arith.constant 0 : index
    %c0_5 = arith.constant 0 : index
    %4 = vector.load %arg6[%c0_4, %c0_5] : memref<32x128xf32, #tpu.memory_space<vmem>>, vector<32x128xf32>
    %5 = tpu.iota {dimensions = array<i32: 1>} : vector<1x128xi32>
    %c32_i32 = arith.constant 32 : i32
    %c0_i32 = arith.constant 0 : i32
    %6 = arith.cmpi eq, %c32_i32, %c0_i32 : i32
    %c1_i32 = arith.constant 1 : i32
    %7 = arith.select %6, %c1_i32, %c32_i32 : i32
    %8 = vector.broadcast %7 : i32 to vector<1x128xi32>
    %9 = arith.remsi %5, %8 : vector<1x128xi32>
    %c0_i32_6 = arith.constant 0 : i32
    %10 = vector.broadcast %c0_i32_6 : i32 to vector<1x128xi32>
    %11 = arith.cmpi ne, %9, %10 : vector<1x128xi32>
    %c0_i32_7 = arith.constant 0 : i32
    %12 = vector.broadcast %c0_i32_7 : i32 to vector<1x128xi32>
    %13 = arith.cmpi slt, %9, %12 : vector<1x128xi32>
    %c0_i32_8 = arith.constant 0 : i32
    %14 = arith.cmpi slt, %7, %c0_i32_8 : i32
    %15 = vector.broadcast %14 : i1 to vector<1x128xi1>
    %16 = vector.broadcast %15 : vector<1x128xi1> to vector<1x128xi1>
    %17 = arith.xori %13, %16 : vector<1x128xi1>
    %18 = arith.andi %17, %11 : vector<1x128xi1>
    %19 = vector.broadcast %7 : i32 to vector<1x128xi32>
    %20 = arith.addi %9, %19 : vector<1x128xi32>
    %21 = arith.select %18, %20, %9 : vector<1x128xi1>, vector<1x128xi32>
    %c16_i32 = arith.constant 16 : i32
    %22 = vector.broadcast %c16_i32 : i32 to vector<1x128xi32>
    %23 = arith.cmpi slt, %21, %22 : vector<1x128xi32>
    %cst_9 = arith.constant 0.000000e+00 : f32
    %24 = vector.broadcast %cst_9 : f32 to vector<8x32xf32>
    %cst_10 = arith.constant 0.000000e+00 : f32
    %25 = vector.broadcast %cst_10 : f32 to vector<8x32xf32>
    %26 = vector.extract_strided_slice %3 {offsets = [0, 0], sizes = [8, 128], strides = [1, 1]} : vector<48x128xf32> to vector<8x128xf32>
    %27 = vector.extract_strided_slice %3 {offsets = [40, 0], sizes = [8, 128], strides = [1, 1]} : vector<48x128xf32> to vector<8x128xf32>
    %28 = vector.shape_cast %23 : vector<1x128xi1> to vector<1x128xi1>
    %29 = vector.broadcast %28 : vector<1x128xi1> to vector<8x128xi1>
    %30 = arith.select %29, %26, %27 : vector<8x128xi1>, vector<8x128xf32>
    %cst_11 = arith.constant dense<0.000000e+00> : vector<8x128xf32>
    %31 = tpu.matmul %24, %4, %cst_11 {dimension_numbers = #tpu.dot_dimension_numbers<[1], [0], [0], [1], [0, 0, 1, 1], [], []>} : vector<8x32xf32>, vector<32x128xf32>, vector<8x128xf32> -> vector<8x128xf32>
    %32 = arith.addf %30, %31 : vector<8x128xf32>
    %33 = vector.extract_strided_slice %32 {offsets = [0, 0], sizes = [8, 96], strides = [1, 1]} : vector<8x128xf32> to vector<8x96xf32>
    %34 = arith.negf %33 : vector<8x96xf32>
    %35 = math.exp %34 : vector<8x96xf32>
    %cst_12 = arith.constant 1.000000e+00 : f32
    %36 = vector.broadcast %cst_12 : f32 to vector<8x96xf32>
    %37 = arith.addf %36, %35 : vector<8x96xf32>
    %38 = arith.divf %36, %37 : vector<8x96xf32>
    %39 = vector.extract_strided_slice %32 {offsets = [0, 96], sizes = [8, 32], strides = [1, 1]} : vector<8x128xf32> to vector<8x32xf32>
    %40 = math.tanh %39 : vector<8x32xf32>
    %41 = vector.extract_strided_slice %38 {offsets = [0, 0], sizes = [8, 32], strides = [1, 1]} : vector<8x96xf32> to vector<8x32xf32>
    %42 = vector.extract_strided_slice %38 {offsets = [0, 32], sizes = [8, 32], strides = [1, 1]} : vector<8x96xf32> to vector<8x32xf32>
    %43 = vector.extract_strided_slice %38 {offsets = [0, 64], sizes = [8, 32], strides = [1, 1]} : vector<8x96xf32> to vector<8x32xf32>
    %44 = arith.mulf %42, %25 : vector<8x32xf32>
    %45 = arith.mulf %41, %40 : vector<8x32xf32>
    %46 = arith.addf %44, %45 : vector<8x32xf32>
    %47 = math.tanh %46 : vector<8x32xf32>
    %48 = arith.mulf %43, %47 : vector<8x32xf32>
    %c0_13 = arith.constant 0 : index
    %c0_14 = arith.constant 0 : index
    %c0_15 = arith.constant 0 : index
    %49 = vector.load %arg2[%c0_13, %c0_14, %c0_15] : memref<6x8x32xf32, #tpu.memory_space<vmem>>, vector<1x8x32xf32>
    %50 = vector.shape_cast %49 : vector<1x8x32xf32> to vector<8x32xf32>
    %51 = arith.subf %46, %25 : vector<8x32xf32>
    %52 = arith.mulf %50, %51 : vector<8x32xf32>
    %53 = arith.addf %25, %52 : vector<8x32xf32>
    %54 = arith.subf %48, %24 : vector<8x32xf32>
    %55 = arith.mulf %50, %54 : vector<8x32xf32>
    %56 = arith.addf %24, %55 : vector<8x32xf32>
    %57 = vector.extract_strided_slice %56 {offsets = [0, 0], sizes = [8, 16], strides = [1, 1]} : vector<8x32xf32> to vector<8x16xf32>
    %c0_16 = arith.constant 0 : index
    %c0_17 = arith.constant 0 : index
    %58 = vector.load %arg12[%c0_16, %c0_17] : memref<8x192xf32, #tpu.memory_space<vmem>>, vector<8x16xf32>
    tpu.vector_store %arg12[%c0_16, %c0_17], %57 {strides = array<i32>} : memref<8x192xf32, #tpu.memory_space<vmem>>, vector<8x16xf32>,
    %59 = vector.extract_strided_slice %56 {offsets = [0, 16], sizes = [8, 16], strides = [1, 1]} : vector<8x32xf32> to vector<8x16xf32>
    %c0_18 = arith.constant 0 : index
    %c176 = arith.constant 176 : index
    %60 = vector.load %arg12[%c0_18, %c176] : memref<8x192xf32, #tpu.memory_space<vmem>>, vector<8x16xf32>
    tpu.vector_store %arg12[%c0_18, %c176], %59 {strides = array<i32>} : memref<8x192xf32, #tpu.memory_space<vmem>>, vector<8x16xf32>,
    %61 = vector.extract_strided_slice %3 {offsets = [8, 0], sizes = [8, 128], strides = [1, 1]} : vector<48x128xf32> to vector<8x128xf32>
    %62 = vector.extract_strided_slice %3 {offsets = [32, 0], sizes = [8, 128], strides = [1, 1]} : vector<48x128xf32> to vector<8x128xf32>
    %63 = vector.shape_cast %23 : vector<1x128xi1> to vector<1x128xi1>
    %64 = vector.broadcast %63 : vector<1x128xi1> to vector<8x128xi1>
    %65 = arith.select %64, %61, %62 : vector<8x128xi1>, vector<8x128xf32>
    %cst_19 = arith.constant dense<0.000000e+00> : vector<8x128xf32>
    %66 = tpu.matmul %56, %4, %cst_19 {dimension_numbers = #tpu.dot_dimension_numbers<[1], [0], [0], [1], [0, 0, 1, 1], [], []>} : vector<8x32xf32>, vector<32x128xf32>, vector<8x128xf32> -> vector<8x128xf32>
    %67 = arith.addf %65, %66 : vector<8x128xf32>
    %68 = vector.extract_strided_slice %67 {offsets = [0, 0], sizes = [8, 96], strides = [1, 1]} : vector<8x128xf32> to vector<8x96xf32>
    %69 = arith.negf %68 : vector<8x96xf32>
    %70 = math.exp %69 : vector<8x96xf32>
    %cst_20 = arith.constant 1.000000e+00 : f32
    %71 = vector.broadcast %cst_20 : f32 to vector<8x96xf32>
    %72 = arith.addf %71, %70 : vector<8x96xf32>
    %73 = arith.divf %71, %72 : vector<8x96xf32>
    %74 = vector.extract_strided_slice %67 {offsets = [0, 96], sizes = [8, 32], strides = [1, 1]} : vector<8x128xf32> to vector<8x32xf32>
    %75 = math.tanh %74 : vector<8x32xf32>
    %76 = vector.extract_strided_slice %73 {offsets = [0, 0], sizes = [8, 32], strides = [1, 1]} : vector<8x96xf32> to vector<8x32xf32>
    %77 = vector.extract_strided_slice %73 {offsets = [0, 32], sizes = [8, 32], strides = [1, 1]} : vector<8x96xf32> to vector<8x32xf32>
    %78 = vector.extract_strided_slice %73 {offsets = [0, 64], sizes = [8, 32], strides = [1, 1]} : vector<8x96xf32> to vector<8x32xf32>
    %79 = arith.mulf %77, %53 : vector<8x32xf32>
    %80 = arith.mulf %76, %75 : vector<8x32xf32>
    %81 = arith.addf %79, %80 : vector<8x32xf32>
    %82 = math.tanh %81 : vector<8x32xf32>
    %83 = arith.mulf %78, %82 : vector<8x32xf32>
    %c1 = arith.constant 1 : index
    %c0_21 = arith.constant 0 : index
    %c0_22 = arith.constant 0 : index
    %84 = vector.load %arg2[%c1, %c0_21, %c0_22] : memref<6x8x32xf32, #tpu.memory_space<vmem>>, vector<1x8x32xf32>
    %85 = vector.shape_cast %84 : vector<1x8x32xf32> to vector<8x32xf32>
    %86 = arith.subf %81, %53 : vector<8x32xf32>
    %87 = arith.mulf %85, %86 : vector<8x32xf32>
    %88 = arith.addf %53, %87 : vector<8x32xf32>
    %89 = arith.subf %83, %56 : vector<8x32xf32>
    %90 = arith.mulf %85, %89 : vector<8x32xf32>
    %91 = arith.addf %56, %90 : vector<8x32xf32>
    %92 = vector.extract_strided_slice %91 {offsets = [0, 0], sizes = [8, 16], strides = [1, 1]} : vector<8x32xf32> to vector<8x16xf32>
    %c0_23 = arith.constant 0 : index
    %c32 = arith.constant 32 : index
    %93 = vector.load %arg12[%c0_23, %c32] : memref<8x192xf32, #tpu.memory_space<vmem>>, vector<8x16xf32>
    tpu.vector_store %arg12[%c0_23, %c32], %92 {strides = array<i32>} : memref<8x192xf32, #tpu.memory_space<vmem>>, vector<8x16xf32>,
    %94 = vector.extract_strided_slice %91 {offsets = [0, 16], sizes = [8, 16], strides = [1, 1]} : vector<8x32xf32> to vector<8x16xf32>
    %c0_24 = arith.constant 0 : index
    %c144 = arith.constant 144 : index
    %95 = vector.load %arg12[%c0_24, %c144] : memref<8x192xf32, #tpu.memory_space<vmem>>, vector<8x16xf32>
    tpu.vector_store %arg12[%c0_24, %c144], %94 {strides = array<i32>} : memref<8x192xf32, #tpu.memory_space<vmem>>, vector<8x16xf32>,
    %96 = vector.extract_strided_slice %3 {offsets = [16, 0], sizes = [8, 128], strides = [1, 1]} : vector<48x128xf32> to vector<8x128xf32>
    %97 = vector.extract_strided_slice %3 {offsets = [24, 0], sizes = [8, 128], strides = [1, 1]} : vector<48x128xf32> to vector<8x128xf32>
    %98 = vector.shape_cast %23 : vector<1x128xi1> to vector<1x128xi1>
    %99 = vector.broadcast %98 : vector<1x128xi1> to vector<8x128xi1>
    %100 = arith.select %99, %96, %97 : vector<8x128xi1>, vector<8x128xf32>
    %cst_25 = arith.constant dense<0.000000e+00> : vector<8x128xf32>
    %101 = tpu.matmul %91, %4, %cst_25 {dimension_numbers = #tpu.dot_dimension_numbers<[1], [0], [0], [1], [0, 0, 1, 1], [], []>} : vector<8x32xf32>, vector<32x128xf32>, vector<8x128xf32> -> vector<8x128xf32>
    %102 = arith.addf %100, %101 : vector<8x128xf32>
    %103 = vector.extract_strided_slice %102 {offsets = [0, 0], sizes = [8, 96], strides = [1, 1]} : vector<8x128xf32> to vector<8x96xf32>
    %104 = arith.negf %103 : vector<8x96xf32>
    %105 = math.exp %104 : vector<8x96xf32>
    %cst_26 = arith.constant 1.000000e+00 : f32
    %106 = vector.broadcast %cst_26 : f32 to vector<8x96xf32>
    %107 = arith.addf %106, %105 : vector<8x96xf32>
    %108 = arith.divf %106, %107 : vector<8x96xf32>
    %109 = vector.extract_strided_slice %102 {offsets = [0, 96], sizes = [8, 32], strides = [1, 1]} : vector<8x128xf32> to vector<8x32xf32>
    %110 = math.tanh %109 : vector<8x32xf32>
    %111 = vector.extract_strided_slice %108 {offsets = [0, 0], sizes = [8, 32], strides = [1, 1]} : vector<8x96xf32> to vector<8x32xf32>
    %112 = vector.extract_strided_slice %108 {offsets = [0, 32], sizes = [8, 32], strides = [1, 1]} : vector<8x96xf32> to vector<8x32xf32>
    %113 = vector.extract_strided_slice %108 {offsets = [0, 64], sizes = [8, 32], strides = [1, 1]} : vector<8x96xf32> to vector<8x32xf32>
    %114 = arith.mulf %112, %88 : vector<8x32xf32>
    %115 = arith.mulf %111, %110 : vector<8x32xf32>
    %116 = arith.addf %114, %115 : vector<8x32xf32>
    %117 = math.tanh %116 : vector<8x32xf32>
    %118 = arith.mulf %113, %117 : vector<8x32xf32>
    %c2 = arith.constant 2 : index
    %c0_27 = arith.constant 0 : index
    %c0_28 = arith.constant 0 : index
    %119 = vector.load %arg2[%c2, %c0_27, %c0_28] : memref<6x8x32xf32, #tpu.memory_space<vmem>>, vector<1x8x32xf32>
    %120 = vector.shape_cast %119 : vector<1x8x32xf32> to vector<8x32xf32>
    %121 = arith.subf %116, %88 : vector<8x32xf32>
    %122 = arith.mulf %120, %121 : vector<8x32xf32>
    %123 = arith.addf %88, %122 : vector<8x32xf32>
    %124 = arith.subf %118, %91 : vector<8x32xf32>
    %125 = arith.mulf %120, %124 : vector<8x32xf32>
    %126 = arith.addf %91, %125 : vector<8x32xf32>
    %127 = vector.extract_strided_slice %126 {offsets = [0, 0], sizes = [8, 16], strides = [1, 1]} : vector<8x32xf32> to vector<8x16xf32>
    %c0_29 = arith.constant 0 : index
    %c64 = arith.constant 64 : index
    %128 = vector.load %arg12[%c0_29, %c64] : memref<8x192xf32, #tpu.memory_space<vmem>>, vector<8x16xf32>
    tpu.vector_store %arg12[%c0_29, %c64], %127 {strides = array<i32>} : memref<8x192xf32, #tpu.memory_space<vmem>>, vector<8x16xf32>,
    %129 = vector.extract_strided_slice %126 {offsets = [0, 16], sizes = [8, 16], strides = [1, 1]} : vector<8x32xf32> to vector<8x16xf32>
    %c0_30 = arith.constant 0 : index
    %c112 = arith.constant 112 : index
    %130 = vector.load %arg12[%c0_30, %c112] : memref<8x192xf32, #tpu.memory_space<vmem>>, vector<8x16xf32>
    tpu.vector_store %arg12[%c0_30, %c112], %129 {strides = array<i32>} : memref<8x192xf32, #tpu.memory_space<vmem>>, vector<8x16xf32>,
    %131 = vector.extract_strided_slice %3 {offsets = [24, 0], sizes = [8, 128], strides = [1, 1]} : vector<48x128xf32> to vector<8x128xf32>
    %132 = vector.extract_strided_slice %3 {offsets = [16, 0], sizes = [8, 128], strides = [1, 1]} : vector<48x128xf32> to vector<8x128xf32>
    %133 = vector.shape_cast %23 : vector<1x128xi1> to vector<1x128xi1>
    %134 = vector.broadcast %133 : vector<1x128xi1> to vector<8x128xi1>
    %135 = arith.select %134, %131, %132 : vector<8x128xi1>, vector<8x128xf32>
    %cst_31 = arith.constant dense<0.000000e+00> : vector<8x128xf32>
    %136 = tpu.matmul %126, %4, %cst_31 {dimension_numbers = #tpu.dot_dimension_numbers<[1], [0], [0], [1], [0, 0, 1, 1], [], []>} : vector<8x32xf32>, vector<32x128xf32>, vector<8x128xf32> -> vector<8x128xf32>
    %137 = arith.addf %135, %136 : vector<8x128xf32>
    %138 = vector.extract_strided_slice %137 {offsets = [0, 0], sizes = [8, 96], strides = [1, 1]} : vector<8x128xf32> to vector<8x96xf32>
    %139 = arith.negf %138 : vector<8x96xf32>
    %140 = math.exp %139 : vector<8x96xf32>
    %cst_32 = arith.constant 1.000000e+00 : f32
    %141 = vector.broadcast %cst_32 : f32 to vector<8x96xf32>
    %142 = arith.addf %141, %140 : vector<8x96xf32>
    %143 = arith.divf %141, %142 : vector<8x96xf32>
    %144 = vector.extract_strided_slice %137 {offsets = [0, 96], sizes = [8, 32], strides = [1, 1]} : vector<8x128xf32> to vector<8x32xf32>
    %145 = math.tanh %144 : vector<8x32xf32>
    %146 = vector.extract_strided_slice %143 {offsets = [0, 0], sizes = [8, 32], strides = [1, 1]} : vector<8x96xf32> to vector<8x32xf32>
    %147 = vector.extract_strided_slice %143 {offsets = [0, 32], sizes = [8, 32], strides = [1, 1]} : vector<8x96xf32> to vector<8x32xf32>
    %148 = vector.extract_strided_slice %143 {offsets = [0, 64], sizes = [8, 32], strides = [1, 1]} : vector<8x96xf32> to vector<8x32xf32>
    %149 = arith.mulf %147, %123 : vector<8x32xf32>
    %150 = arith.mulf %146, %145 : vector<8x32xf32>
    %151 = arith.addf %149, %150 : vector<8x32xf32>
    %152 = math.tanh %151 : vector<8x32xf32>
    %153 = arith.mulf %148, %152 : vector<8x32xf32>
    %c3 = arith.constant 3 : index
    %c0_33 = arith.constant 0 : index
    %c0_34 = arith.constant 0 : index
    %154 = vector.load %arg2[%c3, %c0_33, %c0_34] : memref<6x8x32xf32, #tpu.memory_space<vmem>>, vector<1x8x32xf32>
    %155 = vector.shape_cast %154 : vector<1x8x32xf32> to vector<8x32xf32>
    %156 = arith.subf %151, %123 : vector<8x32xf32>
    %157 = arith.mulf %155, %156 : vector<8x32xf32>
    %158 = arith.addf %123, %157 : vector<8x32xf32>
    %159 = arith.subf %153, %126 : vector<8x32xf32>
    %160 = arith.mulf %155, %159 : vector<8x32xf32>
    %161 = arith.addf %126, %160 : vector<8x32xf32>
    %162 = vector.extract_strided_slice %161 {offsets = [0, 0], sizes = [8, 16], strides = [1, 1]} : vector<8x32xf32> to vector<8x16xf32>
    %c0_35 = arith.constant 0 : index
    %c96 = arith.constant 96 : index
    %163 = vector.load %arg12[%c0_35, %c96] : memref<8x192xf32, #tpu.memory_space<vmem>>, vector<8x16xf32>
    tpu.vector_store %arg12[%c0_35, %c96], %162 {strides = array<i32>} : memref<8x192xf32, #tpu.memory_space<vmem>>, vector<8x16xf32>,
    %164 = vector.extract_strided_slice %161 {offsets = [0, 16], sizes = [8, 16], strides = [1, 1]} : vector<8x32xf32> to vector<8x16xf32>
    %c0_36 = arith.constant 0 : index
    %c80 = arith.constant 80 : index
    %165 = vector.load %arg12[%c0_36, %c80] : memref<8x192xf32, #tpu.memory_space<vmem>>, vector<8x16xf32>
    tpu.vector_store %arg12[%c0_36, %c80], %164 {strides = array<i32>} : memref<8x192xf32, #tpu.memory_space<vmem>>, vector<8x16xf32>,
    %166 = vector.extract_strided_slice %3 {offsets = [32, 0], sizes = [8, 128], strides = [1, 1]} : vector<48x128xf32> to vector<8x128xf32>
    %167 = vector.extract_strided_slice %3 {offsets = [8, 0], sizes = [8, 128], strides = [1, 1]} : vector<48x128xf32> to vector<8x128xf32>
    %168 = vector.shape_cast %23 : vector<1x128xi1> to vector<1x128xi1>
    %169 = vector.broadcast %168 : vector<1x128xi1> to vector<8x128xi1>
    %170 = arith.select %169, %166, %167 : vector<8x128xi1>, vector<8x128xf32>
    %cst_37 = arith.constant dense<0.000000e+00> : vector<8x128xf32>
    %171 = tpu.matmul %161, %4, %cst_37 {dimension_numbers = #tpu.dot_dimension_numbers<[1], [0], [0], [1], [0, 0, 1, 1], [], []>} : vector<8x32xf32>, vector<32x128xf32>, vector<8x128xf32> -> vector<8x128xf32>
    %172 = arith.addf %170, %171 : vector<8x128xf32>
    %173 = vector.extract_strided_slice %172 {offsets = [0, 0], sizes = [8, 96], strides = [1, 1]} : vector<8x128xf32> to vector<8x96xf32>
    %174 = arith.negf %173 : vector<8x96xf32>
    %175 = math.exp %174 : vector<8x96xf32>
    %cst_38 = arith.constant 1.000000e+00 : f32
    %176 = vector.broadcast %cst_38 : f32 to vector<8x96xf32>
    %177 = arith.addf %176, %175 : vector<8x96xf32>
    %178 = arith.divf %176, %177 : vector<8x96xf32>
    %179 = vector.extract_strided_slice %172 {offsets = [0, 96], sizes = [8, 32], strides = [1, 1]} : vector<8x128xf32> to vector<8x32xf32>
    %180 = math.tanh %179 : vector<8x32xf32>
    %181 = vector.extract_strided_slice %178 {offsets = [0, 0], sizes = [8, 32], strides = [1, 1]} : vector<8x96xf32> to vector<8x32xf32>
    %182 = vector.extract_strided_slice %178 {offsets = [0, 32], sizes = [8, 32], strides = [1, 1]} : vector<8x96xf32> to vector<8x32xf32>
    %183 = vector.extract_strided_slice %178 {offsets = [0, 64], sizes = [8, 32], strides = [1, 1]} : vector<8x96xf32> to vector<8x32xf32>
    %184 = arith.mulf %182, %158 : vector<8x32xf32>
    %185 = arith.mulf %181, %180 : vector<8x32xf32>
    %186 = arith.addf %184, %185 : vector<8x32xf32>
    %187 = math.tanh %186 : vector<8x32xf32>
    %188 = arith.mulf %183, %187 : vector<8x32xf32>
    %c4 = arith.constant 4 : index
    %c0_39 = arith.constant 0 : index
    %c0_40 = arith.constant 0 : index
    %189 = vector.load %arg2[%c4, %c0_39, %c0_40] : memref<6x8x32xf32, #tpu.memory_space<vmem>>, vector<1x8x32xf32>
    %190 = vector.shape_cast %189 : vector<1x8x32xf32> to vector<8x32xf32>
    %191 = arith.subf %186, %158 : vector<8x32xf32>
    %192 = arith.mulf %190, %191 : vector<8x32xf32>
    %193 = arith.addf %158, %192 : vector<8x32xf32>
    %194 = arith.subf %188, %161 : vector<8x32xf32>
    %195 = arith.mulf %190, %194 : vector<8x32xf32>
    %196 = arith.addf %161, %195 : vector<8x32xf32>
    %197 = vector.extract_strided_slice %196 {offsets = [0, 0], sizes = [8, 16], strides = [1, 1]} : vector<8x32xf32> to vector<8x16xf32>
    %c0_41 = arith.constant 0 : index
    %c128 = arith.constant 128 : index
    %198 = vector.load %arg12[%c0_41, %c128] : memref<8x192xf32, #tpu.memory_space<vmem>>, vector<8x16xf32>
    tpu.vector_store %arg12[%c0_41, %c128], %197 {strides = array<i32>} : memref<8x192xf32, #tpu.memory_space<vmem>>, vector<8x16xf32>,
    %199 = vector.extract_strided_slice %196 {offsets = [0, 16], sizes = [8, 16], strides = [1, 1]} : vector<8x32xf32> to vector<8x16xf32>
    %c0_42 = arith.constant 0 : index
    %c48 = arith.constant 48 : index
    %200 = vector.load %arg12[%c0_42, %c48] : memref<8x192xf32, #tpu.memory_space<vmem>>, vector<8x16xf32>
    tpu.vector_store %arg12[%c0_42, %c48], %199 {strides = array<i32>} : memref<8x192xf32, #tpu.memory_space<vmem>>, vector<8x16xf32>,
    %201 = vector.extract_strided_slice %3 {offsets = [40, 0], sizes = [8, 128], strides = [1, 1]} : vector<48x128xf32> to vector<8x128xf32>
    %202 = vector.extract_strided_slice %3 {offsets = [0, 0], sizes = [8, 128], strides = [1, 1]} : vector<48x128xf32> to vector<8x128xf32>
    %203 = vector.shape_cast %23 : vector<1x128xi1> to vector<1x128xi1>
    %204 = vector.broadcast %203 : vector<1x128xi1> to vector<8x128xi1>
    %205 = arith.select %204, %201, %202 : vector<8x128xi1>, vector<8x128xf32>
    %cst_43 = arith.constant dense<0.000000e+00> : vector<8x128xf32>
    %206 = tpu.matmul %196, %4, %cst_43 {dimension_numbers = #tpu.dot_dimension_numbers<[1], [0], [0], [1], [0, 0, 1, 1], [], []>} : vector<8x32xf32>, vector<32x128xf32>, vector<8x128xf32> -> vector<8x128xf32>
    %207 = arith.addf %205, %206 : vector<8x128xf32>
    %208 = vector.extract_strided_slice %207 {offsets = [0, 0], sizes = [8, 96], strides = [1, 1]} : vector<8x128xf32> to vector<8x96xf32>
    %209 = arith.negf %208 : vector<8x96xf32>
    %210 = math.exp %209 : vector<8x96xf32>
    %cst_44 = arith.constant 1.000000e+00 : f32
    %211 = vector.broadcast %cst_44 : f32 to vector<8x96xf32>
    %212 = arith.addf %211, %210 : vector<8x96xf32>
    %213 = arith.divf %211, %212 : vector<8x96xf32>
    %214 = vector.extract_strided_slice %207 {offsets = [0, 96], sizes = [8, 32], strides = [1, 1]} : vector<8x128xf32> to vector<8x32xf32>
    %215 = math.tanh %214 : vector<8x32xf32>
    %216 = vector.extract_strided_slice %213 {offsets = [0, 0], sizes = [8, 32], strides = [1, 1]} : vector<8x96xf32> to vector<8x32xf32>
    %217 = vector.extract_strided_slice %213 {offsets = [0, 32], sizes = [8, 32], strides = [1, 1]} : vector<8x96xf32> to vector<8x32xf32>
    %218 = vector.extract_strided_slice %213 {offsets = [0, 64], sizes = [8, 32], strides = [1, 1]} : vector<8x96xf32> to vector<8x32xf32>
    %219 = arith.mulf %217, %193 : vector<8x32xf32>
    %220 = arith.mulf %216, %215 : vector<8x32xf32>
    %221 = arith.addf %219, %220 : vector<8x32xf32>
    %222 = math.tanh %221 : vector<8x32xf32>
    %223 = arith.mulf %218, %222 : vector<8x32xf32>
    %c5 = arith.constant 5 : index
    %c0_45 = arith.constant 0 : index
    %c0_46 = arith.constant 0 : index
    %224 = vector.load %arg2[%c5, %c0_45, %c0_46] : memref<6x8x32xf32, #tpu.memory_space<vmem>>, vector<1x8x32xf32>
    %225 = vector.shape_cast %224 : vector<1x8x32xf32> to vector<8x32xf32>
    %226 = arith.subf %223, %196 : vector<8x32xf32>
    %227 = arith.mulf %225, %226 : vector<8x32xf32>
    %228 = arith.addf %196, %227 : vector<8x32xf32>
    %229 = vector.extract_strided_slice %228 {offsets = [0, 0], sizes = [8, 16], strides = [1, 1]} : vector<8x32xf32> to vector<8x16xf32>
    %c0_47 = arith.constant 0 : index
    %c160 = arith.constant 160 : index
    %230 = vector.load %arg12[%c0_47, %c160] : memref<8x192xf32, #tpu.memory_space<vmem>>, vector<8x16xf32>
    tpu.vector_store %arg12[%c0_47, %c160], %229 {strides = array<i32>} : memref<8x192xf32, #tpu.memory_space<vmem>>, vector<8x16xf32>,
    %231 = vector.extract_strided_slice %228 {offsets = [0, 16], sizes = [8, 16], strides = [1, 1]} : vector<8x32xf32> to vector<8x16xf32>
    %c0_48 = arith.constant 0 : index
    %c16 = arith.constant 16 : index
    %232 = vector.load %arg12[%c0_48, %c16] : memref<8x192xf32, #tpu.memory_space<vmem>>, vector<8x16xf32>
    tpu.vector_store %arg12[%c0_48, %c16], %231 {strides = array<i32>} : memref<8x192xf32, #tpu.memory_space<vmem>>, vector<8x16xf32>,
    %c0_49 = arith.constant 0 : index
    %c0_50 = arith.constant 0 : index
    %233 = vector.load %arg12[%c0_49, %c0_50] : memref<8x192xf32, #tpu.memory_space<vmem>>, vector<8x192xf32>
    %c0_51 = arith.constant 0 : index
    %c0_52 = arith.constant 0 : index
    %234 = vector.load %arg3[%c0_51, %c0_52] : memref<8x192xf32, #tpu.memory_space<vmem>>, vector<8x192xf32>
    %235 = arith.mulf %233, %234 : vector<8x192xf32>
    %c0_53 = arith.constant 0 : index
    %c0_54 = arith.constant 0 : index
    %236 = vector.load %arg7[%c0_53, %c0_54] : memref<192x64xf32, #tpu.memory_space<vmem>>, vector<192x64xf32>
    %cst_55 = arith.constant dense<0.000000e+00> : vector<8x64xf32>
    %237 = tpu.matmul %235, %236, %cst_55 {dimension_numbers = #tpu.dot_dimension_numbers<[1], [0], [0], [1], [0, 0, 1, 1], [], []>} : vector<8x192xf32>, vector<192x64xf32>, vector<8x64xf32> -> vector<8x64xf32>
    %c0_56 = arith.constant 0 : index
    %c0_57 = arith.constant 0 : index
    %238 = vector.load %arg10[%c0_56, %c0_57] : memref<4x256xf32, #tpu.memory_space<vmem>>, vector<1x64xf32>
    %239 = vector.broadcast %238 : vector<1x64xf32> to vector<8x64xf32>
    %240 = arith.addf %237, %239 : vector<8x64xf32>
    %cst_58 = arith.constant 0.000000e+00 : f32
    %241 = vector.broadcast %cst_58 : f32 to vector<8x64xf32>
    %242 = arith.cmpf ogt, %240, %241 : vector<8x64xf32>
    %cst_59 = arith.constant 2.000000e-01 : f32
    %243 = vector.broadcast %cst_59 : f32 to vector<8x64xf32>
    %244 = arith.mulf %243, %240 : vector<8x64xf32>
    %245 = arith.select %242, %240, %244 : vector<8x64xi1>, vector<8x64xf32>
    %c0_60 = arith.constant 0 : index
    %c0_61 = arith.constant 0 : index
    %246 = vector.load %arg4[%c0_60, %c0_61] : memref<1x64xf32, #tpu.memory_space<vmem>>, vector<1x64xf32>
    %247 = vector.broadcast %246 : vector<1x64xf32> to vector<8x64xf32>
    %248 = arith.mulf %245, %247 : vector<8x64xf32>
    %c0_62 = arith.constant 0 : index
    %c0_63 = arith.constant 0 : index
    %249 = vector.load %arg8[%c0_62, %c0_63] : memref<64x256xf32, #tpu.memory_space<vmem>>, vector<64x256xf32>
    %cst_64 = arith.constant dense<0.000000e+00> : vector<8x256xf32>
    %250 = tpu.matmul %248, %249, %cst_64 {dimension_numbers = #tpu.dot_dimension_numbers<[1], [0], [0], [1], [0, 0, 1, 1], [], []>} : vector<8x64xf32>, vector<64x256xf32>, vector<8x256xf32> -> vector<8x256xf32>
    %c1_65 = arith.constant 1 : index
    %c0_66 = arith.constant 0 : index
    %251 = vector.load %arg10[%c1_65, %c0_66] : memref<4x256xf32, #tpu.memory_space<vmem>>, vector<1x256xf32>
    %252 = vector.broadcast %251 : vector<1x256xf32> to vector<8x256xf32>
    %253 = arith.addf %250, %252 : vector<8x256xf32>
    %cst_67 = arith.constant 0.000000e+00 : f32
    %254 = vector.broadcast %cst_67 : f32 to vector<8x256xf32>
    %255 = arith.cmpf ogt, %253, %254 : vector<8x256xf32>
    %cst_68 = arith.constant 2.000000e-01 : f32
    %256 = vector.broadcast %cst_68 : f32 to vector<8x256xf32>
    %257 = arith.mulf %256, %253 : vector<8x256xf32>
    %258 = arith.select %255, %253, %257 : vector<8x256xi1>, vector<8x256xf32>
    %c0_69 = arith.constant 0 : index
    %c0_70 = arith.constant 0 : index
    %259 = vector.load %arg9[%c0_69, %c0_70] : memref<256x32xf32, #tpu.memory_space<vmem>>, vector<256x32xf32>
    %cst_71 = arith.constant dense<0.000000e+00> : vector<8x32xf32>
    %260 = tpu.matmul %258, %259, %cst_71 {dimension_numbers = #tpu.dot_dimension_numbers<[1], [0], [0], [1], [0, 0, 1, 1], [], []>} : vector<8x256xf32>, vector<256x32xf32>, vector<8x32xf32> -> vector<8x32xf32>
    %c2_72 = arith.constant 2 : index
    %c0_73 = arith.constant 0 : index
    %261 = vector.load %arg10[%c2_72, %c0_73] : memref<4x256xf32, #tpu.memory_space<vmem>>, vector<1x32xf32>
    %262 = vector.broadcast %261 : vector<1x32xf32> to vector<8x32xf32>
    %263 = arith.addf %260, %262 : vector<8x32xf32>
    %cst_74 = arith.constant 0.000000e+00 : f32
    %264 = vector.broadcast %cst_74 : f32 to vector<8x32xf32>
    %265 = arith.cmpf ogt, %263, %264 : vector<8x32xf32>
    %cst_75 = arith.constant 2.000000e-01 : f32
    %266 = vector.broadcast %cst_75 : f32 to vector<8x32xf32>
    %267 = arith.mulf %266, %263 : vector<8x32xf32>
    %268 = arith.select %265, %263, %267 : vector<8x32xi1>, vector<8x32xf32>
    %c3_76 = arith.constant 3 : index
    %c0_77 = arith.constant 0 : index
    %269 = vector.load %arg10[%c3_76, %c0_77] : memref<4x256xf32, #tpu.memory_space<vmem>>, vector<1x32xf32>
    %c3_78 = arith.constant 3 : index
    %c32_79 = arith.constant 32 : index
    %270 = vector.load %arg10[%c3_78, %c32_79] : memref<4x256xf32, #tpu.memory_space<vmem>>, vector<1x1xf32>
    %271 = vector.broadcast %269 : vector<1x32xf32> to vector<8x32xf32>
    %272 = arith.mulf %268, %271 : vector<8x32xf32>
    %cst_80 = arith.constant dense<0.000000e+00> : vector<8xf32>
    %273 = vector.multi_reduction <add>, %272, %cst_80 [1] : vector<8x32xf32> to vector<8xf32>
    %274 = vector.shape_cast %273 : vector<8xf32> to vector<8x1xf32>
    %275 = vector.broadcast %270 : vector<1x1xf32> to vector<8x1xf32>
    %276 = arith.addf %274, %275 : vector<8x1xf32>
    %277 = arith.negf %276 : vector<8x1xf32>
    %278 = math.exp %277 : vector<8x1xf32>
    %cst_81 = arith.constant 1.000000e+00 : f32
    %279 = vector.broadcast %cst_81 : f32 to vector<8x1xf32>
    %280 = arith.addf %279, %278 : vector<8x1xf32>
    %281 = arith.divf %279, %280 : vector<8x1xf32>
    %c0_82 = arith.constant 0 : index
    %c0_83 = arith.constant 0 : index
    %282 = vector.load %arg11[%c0_82, %c0_83] : memref<8x1xf32, #tpu.memory_space<vmem>>, vector<8x1xf32>
    tpu.vector_store %arg11[%c0_82, %c0_83], %281 {strides = array<i32>} : memref<8x1xf32, #tpu.memory_space<vmem>>, vector<8x1xf32>,
    return
  }
  func.func @transform_0(%arg0: i32) -> (i32, i32, i32) {
    %c0_i32 = arith.constant 0 : i32
    %c0_i32_0 = arith.constant 0 : i32
    %c0_i32_1 = arith.constant 0 : i32
    return %c0_i32, %arg0, %c0_i32_0 : i32, i32, i32
  }
  func.func @transform_1(%arg0: i32) -> (i32, i32, i32) {
    %c0_i32 = arith.constant 0 : i32
    %c0_i32_0 = arith.constant 0 : i32
    %c0_i32_1 = arith.constant 0 : i32
    return %c0_i32, %arg0, %c0_i32_0 : i32, i32, i32
  }
  func.func @transform_2(%arg0: i32) -> (i32, i32) {
    %c0_i32 = arith.constant 0 : i32
    %c0_i32_0 = arith.constant 0 : i32
    return %arg0, %c0_i32 : i32, i32
  }
  func.func @transform_3(%arg0: i32) -> (i32, i32) {
    %c0_i32 = arith.constant 0 : i32
    %c0_i32_0 = arith.constant 0 : i32
    %c0_i32_1 = arith.constant 0 : i32
    return %c0_i32, %c0_i32_0 : i32, i32
  }
  func.func @transform_4(%arg0: i32) -> (i32, i32) {
    %c0_i32 = arith.constant 0 : i32
    %c0_i32_0 = arith.constant 0 : i32
    %c0_i32_1 = arith.constant 0 : i32
    return %c0_i32, %c0_i32_0 : i32, i32
  }
  func.func @transform_5(%arg0: i32) -> (i32, i32) {
    %c0_i32 = arith.constant 0 : i32
    %c0_i32_0 = arith.constant 0 : i32
    %c0_i32_1 = arith.constant 0 : i32
    return %c0_i32, %c0_i32_0 : i32, i32
  }
  func.func @transform_6(%arg0: i32) -> (i32, i32) {
    %c0_i32 = arith.constant 0 : i32
    %c0_i32_0 = arith.constant 0 : i32
    %c0_i32_1 = arith.constant 0 : i32
    return %c0_i32, %c0_i32_0 : i32, i32
  }
  func.func @transform_7(%arg0: i32) -> (i32, i32) {
    %c0_i32 = arith.constant 0 : i32
    %c0_i32_0 = arith.constant 0 : i32
    %c0_i32_1 = arith.constant 0 : i32
    return %c0_i32, %c0_i32_0 : i32, i32
  }
  func.func @transform_8(%arg0: i32) -> (i32, i32) {
    %c0_i32 = arith.constant 0 : i32
    %c0_i32_0 = arith.constant 0 : i32
    %c0_i32_1 = arith.constant 0 : i32
    return %c0_i32, %c0_i32_0 : i32, i32
  }
  func.func @transform_9(%arg0: i32) -> (i32, i32) {
    %c0_i32 = arith.constant 0 : i32
    %c0_i32_0 = arith.constant 0 : i32
    %c0_i32_1 = arith.constant 0 : i32
    return %c0_i32, %c0_i32_0 : i32, i32
  }
  func.func @transform_10(%arg0: i32) -> (i32, i32) {
    %c0_i32 = arith.constant 0 : i32
    %c0_i32_0 = arith.constant 0 : i32
    return %arg0, %c0_i32 : i32, i32
  }
}

</mosaic_0001>

<llo_original>
// kernel: discriminator_forward.1
$region0: #{discriminator_forward.1}
  #allocation0 [shape = 'u32[]', space=smem, size = 0x4, offset = 0x4, fixed_abs, tag = 'smem constant byte address 0x4 - core index']
  #allocation1 [shape = 'u32[144,128]{1,0:T(1,128)}', space=vmem, size = 0x12000, scoped, tag = 'internal scratch']
  #allocation2 [shape = 'f32[8,192]{1,0:T(8,128)}', space=vmem, size = 0x2000, scoped, tag = 'scratch operand']
  %s0 = inlined_call_operand.vmem [shape: f32[6,8,26], index: 0, kind: input, shape index: {}]
  %s1 = inlined_call_operand.vmem [shape: f32[6,8,32], index: 1, kind: input, shape index: {}]
  %s2 = inlined_call_operand.vmem [shape: f32[8,192], index: 2, kind: input, shape index: {}]
  %s3 = inlined_call_operand.vmem [shape: f32[1,64], index: 3, kind: input, shape index: {}]
  %s4 = inlined_call_operand.vmem [shape: f32[26,128], index: 4, kind: input, shape index: {}]
  %s5 = inlined_call_operand.vmem [shape: f32[32,128], index: 5, kind: input, shape index: {}]
  %s6 = inlined_call_operand.vmem [shape: f32[192,64], index: 6, kind: input, shape index: {}]
  %s7 = inlined_call_operand.vmem [shape: f32[64,256], index: 7, kind: input, shape index: {}]
  %s8 = inlined_call_operand.vmem [shape: f32[256,32], index: 8, kind: input, shape index: {}]
  %s9 = inlined_call_operand.vmem [shape: f32[4,256], index: 9, kind: input, shape index: {}]
  %s10 = inlined_call_operand.vmem [shape: f32[8,1], index: 10, kind: output, shape index: {}]
  %s11 = sld [smem:[#allocation0]]
  $region50: #{discriminator_forward.1} parent=0
    _
  %s13 = ssub.s32 1, %s11
  %s14 = scalar_select 0, %s13, %s11
  // Predicated region
  $region2: #{discriminator_forward.1} parent=0 // pred_check
    _
  $region3: #{discriminator_forward.1} parent=0 // pred_check_branch
    %16 = sbr.rel (0) target = $region5
  $region4: #{discriminator_forward.1} parent=0 // pred_region
    _
  $region5: #{discriminator_forward.1} parent=0 // pred_fallthru
    _
  // Predicated region
  $region6: #{discriminator_forward.1} parent=0 // pred_check
    _
  $region7: #{discriminator_forward.1} parent=0 // pred_check_branch
    %18 = sbr.rel (0) target = $region9
  $region8: #{discriminator_forward.1} parent=0 // pred_region
    _
  $region9: #{discriminator_forward.1} parent=0 // pred_fallthru
    _
  // Predicated region
  $region10: #{discriminator_forward.1} parent=0 // pred_check
    _
  $region11: #{discriminator_forward.1} parent=0 // pred_check_branch
    %20 = sbr.rel (0) target = $region13
  $region12: #{discriminator_forward.1} parent=0 // pred_region
    _
  $region13: #{discriminator_forward.1} parent=0 // pred_fallthru
    _
  // Predicated region
  $region14: #{discriminator_forward.1} parent=0 // pred_check
    _
  $region15: #{discriminator_forward.1} parent=0 // pred_check_branch
    %22 = sbr.rel (0) target = $region17
  $region16: #{discriminator_forward.1} parent=0 // pred_region
    _
  $region17: #{discriminator_forward.1} parent=0 // pred_fallthru
    _
  // Predicated region
  $region18: #{discriminator_forward.1} parent=0 // pred_check
    _
  $region19: #{discriminator_forward.1} parent=0 // pred_check_branch
    %24 = sbr.rel (0) target = $region21
  $region20: #{discriminator_forward.1} parent=0 // pred_region
    _
  $region21: #{discriminator_forward.1} parent=0 // pred_fallthru
    _
  // Predicated region
  $region22: #{discriminator_forward.1} parent=0 // pred_check
    _
  $region23: #{discriminator_forward.1} parent=0 // pred_check_branch
    %26 = sbr.rel (0) target = $region25
  $region24: #{discriminator_forward.1} parent=0 // pred_region
    _
  $region25: #{discriminator_forward.1} parent=0 // pred_fallthru
    _
  // Predicated region
  $region26: #{discriminator_forward.1} parent=0 // pred_check
    _
  $region27: #{discriminator_forward.1} parent=0 // pred_check_branch
    %28 = sbr.rel (0) target = $region29
  $region28: #{discriminator_forward.1} parent=0 // pred_region
    _
  $region29: #{discriminator_forward.1} parent=0 // pred_fallthru
    _
  // Predicated region
  $region30: #{discriminator_forward.1} parent=0 // pred_check
    _
  $region31: #{discriminator_forward.1} parent=0 // pred_check_branch
    %30 = sbr.rel (0) target = $region33
  $region32: #{discriminator_forward.1} parent=0 // pred_region
    _
  $region33: #{discriminator_forward.1} parent=0 // pred_fallthru
    _
  // Predicated region
  $region34: #{discriminator_forward.1} parent=0 // pred_check
    _
  $region35: #{discriminator_forward.1} parent=0 // pred_check_branch
    %32 = sbr.rel (0) target = $region37
  $region36: #{discriminator_forward.1} parent=0 // pred_region
    _
  $region37: #{discriminator_forward.1} parent=0 // pred_fallthru
    _
  // Predicated region
  $region38: #{discriminator_forward.1} parent=0 // pred_check
    _
  $region39: #{discriminator_forward.1} parent=0 // pred_check_branch
    %34 = sbr.rel (0) target = $region41
  $region40: #{discriminator_forward.1} parent=0 // pred_region
    _
  $region41: #{discriminator_forward.1} parent=0 // pred_fallthru
    _
  %v35 = vld [vmem:[%s0] sm:$0xff]
  %v36 = vld [vmem:[%s0 + $0x8] sm:$0xff]
  %v37 = vld [vmem:[%s0 + $0x10] sm:$0xff]
  %v38 = vld [vmem:[%s0 + $0x18] sm:$0xff]
  %v39 = vld [vmem:[%s0 + $0x20] sm:$0xff]
  %v40 = vld [vmem:[%s0 + $0x28] sm:$0xff]
  %v41 = vld [vmem:[%s4] sm:$0xff]
  %v42 = vld [vmem:[%s4 + $0x8] sm:$0xff]
  %v43 = vld [vmem:[%s4 + $0x10] sm:$0xff]
  %v44 = vld [vmem:[%s4 + $0x18] sm:$0x3]
  %vm45 = vcmask 211968
  %v47 = vsel %vm45, %v35, 0
  %v50 = vsel %vm45, %v36, 0
  %v53 = vsel %vm45, %v37, 0
  %v56 = vsel %vm45, %v38, 0
  %v59 = vsel %vm45, %v39, 0
  %v62 = vsel %vm45, %v40, 0
  %vm64 = vcmask 1041408
  %v66 = vsel %vm64, %v44, 0
  %68 = vmatprep.subr.mxu0 0.0
  %69 = vmatpush1.msra.mxu0 %v41
  %70 = vmatprep.subr.mxu0 0.0
  %71 = vmatpush1.msra.mxu0 %v42
  %72 = vmatprep.subr.mxu0 0.0
  %73 = vmatpush1.msra.mxu0 %v43
  %74 = vmatprep.subr.mxu0 0.0
  %75 = vmatpush1.msra.mxu0 %v66
  %76 = vmatprep.subr.mxu0 0.0
  %77 = vmatpush1.msra.mxu0 0.0
  %78 = vmatprep.subr.mxu0 0.0
  %79 = vmatpush1.msra.mxu0 0.0
  %80 = vmatprep.subr.mxu0 0.0
  %81 = vmatpush1.msra.mxu0 0.0
  %82 = vmatprep.subr.mxu0 0.0
  %83 = vmatpush1.msra.mxu0 0.0
  %84 = vmatprep.subr.mxu0 0.0
  %85 = vmatpush1.msra.mxu0 0.0
  %86 = vmatprep.subr.mxu0 0.0
  %87 = vmatpush1.msra.mxu0 0.0
  %88 = vmatprep.subr.mxu0 0.0
  %89 = vmatpush1.msra.mxu0 0.0
  %90 = vmatprep.subr.mxu0 0.0
  %91 = vmatpush1.msra.mxu0 0.0
  %92 = vmatprep.subr.mxu0 0.0
  %93 = vmatpush1.msra.mxu0 0.0
  %94 = vmatprep.subr.mxu0 0.0
  %95 = vmatpush1.msra.mxu0 0.0
  %96 = vmatprep.subr.mxu0 0.0
  %97 = vmatpush1.msra.mxu0 0.0
  %98 = vmatprep.subr.mxu0 0.0
  %99 = vmatpush1.msra.mxu0 0.0
  %100 = vmatprep.subr.mxu0 0.0
  %101 = vmatpush1.msra.mxu0 0.0
  %102 = vmatprep.subr.mxu0 0.0
  %103 = vmatpush1.msra.mxu0 0.0
  %104 = vmatprep.subr.mxu0 0.0
  %105 = vmatpush1.msra.mxu0 0.0
  %106 = vmatprep.subr.mxu0 0.0
  %107 = vmatpush1.msra.mxu0 0.0
  %108 = vmatprep.subr.mxu0 0.0
  %109 = vmatpush1.msra.mxu0 0.0
  %110 = vmatprep.subr.mxu0 0.0
  %111 = vmatpush1.msra.mxu0 0.0
  %112 = vmatprep.subr.mxu0 0.0
  %113 = vmatpush1.msra.mxu0 0.0
  %114 = vmatprep.subr.mxu0 0.0
  %115 = vmatpush1.msra.mxu0 0.0
  %116 = vmatprep.subr.mxu0 0.0
  %117 = vmatpush1.msra.mxu0 0.0
  %118 = vmatprep.subr.mxu0 0.0
  %119 = vmatpush1.msra.mxu0 0.0
  %120 = vmatprep.subr.mxu0 0.0
  %121 = vmatpush1.msra.mxu0 0.0
  %122 = vmatprep.subr.mxu0 0.0
  %123 = vmatpush1.msra.mxu0 0.0
  %124 = vmatprep.subr.mxu0 0.0
  %125 = vmatpush1.msra.mxu0 0.0
  %126 = vmatprep.subr.mxu0 0.0
  %127 = vmatpush1.msra.mxu0 0.0
  %128 = vmatprep.subr.mxu0 0.0
  %129 = vmatpush1.msra.mxu0 0.0
  %130 = vmatprep.subr.mxu0 0.0
  %131 = vmatpush1.msra.mxu0 0.0
  %132 = vmatprep.mubr.f32.mxu0 0.0
  %133 = vmatmul.mubr.f32.gmra.mrb[0].mxu0 %v47
  %v134 = vpop.f32.mrb[0].mxu0
  %v135 = vadd.f32 0.0, %v134
  %v136 = vpop.f32.mrb[0].mxu0
  %137 = vmatprep.mubr.f32.mxu0 0.0
  %138 = vmatmul.mubr.f32.gmra.mrb[0].mxu0 %v50
  %v139 = vpop.f32.mrb[0].mxu0
  %v140 = vadd.f32 0.0, %v139
  %v141 = vpop.f32.mrb[0].mxu0
  %142 = vmatprep.mubr.f32.mxu0 0.0
  %143 = vmatmul.mubr.f32.gmra.mrb[0].mxu0 %v53
  %v144 = vpop.f32.mrb[0].mxu0
  %v145 = vadd.f32 0.0, %v144
  %v146 = vpop.f32.mrb[0].mxu0
  %147 = vmatprep.mubr.f32.mxu0 0.0
  %148 = vmatmul.mubr.f32.gmra.mrb[0].mxu0 %v56
  %v149 = vpop.f32.mrb[0].mxu0
  %v150 = vadd.f32 0.0, %v149
  %v151 = vpop.f32.mrb[0].mxu0
  %152 = vmatprep.mubr.f32.mxu0 0.0
  %153 = vmatmul.mubr.f32.gmra.mrb[0].mxu0 %v59
  %v154 = vpop.f32.mrb[0].mxu0
  %v155 = vadd.f32 0.0, %v154
  %v156 = vpop.f32.mrb[0].mxu0
  %157 = vmatprep.mubr.f32.mxu0 0.0
  %158 = vmatmul.mubr.f32.gmra.mrb[0].mxu0 %v62
  %v159 = vpop.f32.mrb[0].mxu0
  %v160 = vadd.f32 0.0, %v159
  %v161 = vpop.f32.mrb[0].mxu0
  %162 = vdwg.mxu0
  %v163 = vld [vmem:[%s5] sm:$0xff]
  %v164 = vld [vmem:[%s5 + $0x8] sm:$0xff]
  %v165 = vld [vmem:[%s5 + $0x10] sm:$0xff]
  %v166 = vld [vmem:[%s5 + $0x18] sm:$0xff]
  %v167 = vlaneseq
  %v168 = vand.u32 %v167, 127
  %vm169 = vcmp.lt.s32.totalorder %v168, 0
  %v170 = vsub.s32 0, %v168
  %v171 = vsel %vm169, %v170, %v168
  %v172 = vshrl.u32 %v171, 5
  %v173 = vand.u32 %v171, 31
  %v174 = vsub.s32 0, %v173
  %v175 = vsel %vm169, %v174, %v173
  %vm176 = vcmp.ne.s32.totalorder %v175, 0
  %vm177 = vcmp.lt.s32.totalorder %v175, 0
  %vm178 = vmand %vm177, %vm176
  %v179 = vadd.s32 %v175, 32
  %v180 = vsel %vm178, %v179, %v175
  %vm181 = vcmp.lt.s32.totalorder %v180, 16
  %v182 = vsel %vm181, 1, 0
  %vm183 = vcmp.eq.s32.totalorder %v182, 1
  %v184 = vsel %vm183, %v135, %v160
  %vm185 = vcmask 261120
  %v187 = vsel %vm185, 0.0, 0
  %189 = vmatprep.subr.mxu0 0.0
  %190 = vmatpush1.msra.mxu0 %v163
  %191 = vmatprep.subr.mxu0 0.0
  %192 = vmatpush1.msra.mxu0 %v164
  %193 = vmatprep.subr.mxu0 0.0
  %194 = vmatpush1.msra.mxu0 %v165
  %195 = vmatprep.subr.mxu0 0.0
  %196 = vmatpush1.msra.mxu0 %v166
  %197 = vmatprep.subr.mxu0 0.0
  %198 = vmatpush1.msra.mxu0 0.0
  %199 = vmatprep.subr.mxu0 0.0
  %200 = vmatpush1.msra.mxu0 0.0
  %201 = vmatprep.subr.mxu0 0.0
  %202 = vmatpush1.msra.mxu0 0.0
  %203 = vmatprep.subr.mxu0 0.0
  %204 = vmatpush1.msra.mxu0 0.0
  %205 = vmatprep.subr.mxu0 0.0
  %206 = vmatpush1.msra.mxu0 0.0
  %207 = vmatprep.subr.mxu0 0.0
  %208 = vmatpush1.msra.mxu0 0.0
  %209 = vmatprep.subr.mxu0 0.0
  %210 = vmatpush1.msra.mxu0 0.0
  %211 = vmatprep.subr.mxu0 0.0
  %212 = vmatpush1.msra.mxu0 0.0
  %213 = vmatprep.subr.mxu0 0.0
  %214 = vmatpush1.msra.mxu0 0.0
  %215 = vmatprep.subr.mxu0 0.0
  %216 = vmatpush1.msra.mxu0 0.0
  %217 = vmatprep.subr.mxu0 0.0
  %218 = vmatpush1.msra.mxu0 0.0
  %219 = vmatprep.subr.mxu0 0.0
  %220 = vmatpush1.msra.mxu0 0.0
  %221 = vmatprep.subr.mxu0 0.0
  %222 = vmatpush1.msra.mxu0 0.0
  %223 = vmatprep.subr.mxu0 0.0
  %224 = vmatpush1.msra.mxu0 0.0
  %225 = vmatprep.subr.mxu0 0.0
  %226 = vmatpush1.msra.mxu0 0.0
  %227 = vmatprep.subr.mxu0 0.0
  %228 = vmatpush1.msra.mxu0 0.0
  %229 = vmatprep.subr.mxu0 0.0
  %230 = vmatpush1.msra.mxu0 0.0
  %231 = vmatprep.subr.mxu0 0.0
  %232 = vmatpush1.msra.mxu0 0.0
  %233 = vmatprep.subr.mxu0 0.0
  %234 = vmatpush1.msra.mxu0 0.0
  %235 = vmatprep.subr.mxu0 0.0
  %236 = vmatpush1.msra.mxu0 0.0
  %237 = vmatprep.subr.mxu0 0.0
  %238 = vmatpush1.msra.mxu0 0.0
  %239 = vmatprep.subr.mxu0 0.0
  %240 = vmatpush1.msra.mxu0 0.0
  %241 = vmatprep.subr.mxu0 0.0
  %242 = vmatpush1.msra.mxu0 0.0
  %243 = vmatprep.subr.mxu0 0.0
  %244 = vmatpush1.msra.mxu0 0.0
  %245 = vmatprep.subr.mxu0 0.0
  %246 = vmatpush1.msra.mxu0 0.0
  %247 = vmatprep.subr.mxu0 0.0
  %248 = vmatpush1.msra.mxu0 0.0
  %249 = vmatprep.subr.mxu0 0.0
  %250 = vmatpush1.msra.mxu0 0.0
  %251 = vmatprep.subr.mxu0 0.0
  %252 = vmatpush1.msra.mxu0 0.0
  %253 = vmatprep.mubr.f32.mxu0 0.0
  %254 = vmatmul.mubr.f32.gmra.mrb[0].mxu0 %v187
  %v255 = vpop.f32.mrb[0].mxu0
  %v256 = vadd.f32 0.0, %v255
  %v257 = vpop.f32.mrb[0].mxu0
  %258 = vdwg.mxu0
  %v259 = vadd.f32 %v184, %v256
  %v260 = vxor.u32 %v259, 2147483648
  %v261 = vmul.f32 %v260, 1.442695
  %v262 = vpow.pop %v261
  %v263 = vadd.f32 %v262, 1.0
  %v264 = vrcp.pop %v263
  %v265 = vmul.f32 1.0, %v264
  %v266 = vtanh.pop %v259
  %v267 = vmul.f32 %v265, 0.0
  %269 = vrot.lane.b32.xlu0 %v266, 32
  %v270 = vpop.permute.xlu0 %269
  %v272 = vmul.f32 %v265, %v270
  %274 = vrot.lane.b32.xlu0 %v272, 32
  %v275 = vpop.permute.xlu0 %274
  %v277 = vadd.f32 %v267, %v275
  %v278 = vtanh.pop %v277
  %280 = vrot.lane.b32.xlu0 %v278, 32
  %v281 = vpop.permute.xlu0 %280
  %v283 = vmul.f32 %v265, %v281
  %v284 = vld [vmem:[%s1] sm:$0xff]
  %286 = vrot.lane.b32.xlu0 %v277, 96
  %v287 = vpop.permute.xlu0 %286
  %v289 = vmul.f32 %v284, %v287
  %v290 = vadd.f32 %v289, 0.0
  %292 = vrot.lane.b32.xlu0 %v283, 64
  %v293 = vpop.permute.xlu0 %292
  %v295 = vmul.f32 %v284, %v293
  %v296 = vadd.f32 %v295, 0.0
  %vm297 = vcmask 130048
  %298 = vst.msk [vmem:[#allocation2] sm:$0xff] %vm297, %v296
  %300 = vrot.lane.b32.xlu0 %v296, 32
  %v301 = vpop.permute.xlu0 %300
  %vm303 = vcmask 523648
  %304 = vst.msk [vmem:[#allocation2 + $0x8] sm:$0xff] %vm303, %v301
  %v305 = vsel %vm183, %v140, %v155
  %v306 = vsel %vm185, %v296, 0
  %308 = vmatprep.subr.mxu0 0.0
  %309 = vmatpush1.msra.mxu0 %v163
  %310 = vmatprep.subr.mxu0 0.0
  %311 = vmatpush1.msra.mxu0 %v164
  %312 = vmatprep.subr.mxu0 0.0
  %313 = vmatpush1.msra.mxu0 %v165
  %314 = vmatprep.subr.mxu0 0.0
  %315 = vmatpush1.msra.mxu0 %v166
  %316 = vmatprep.subr.mxu0 0.0
  %317 = vmatpush1.msra.mxu0 0.0
  %318 = vmatprep.subr.mxu0 0.0
  %319 = vmatpush1.msra.mxu0 0.0
  %320 = vmatprep.subr.mxu0 0.0
  %321 = vmatpush1.msra.mxu0 0.0
  %322 = vmatprep.subr.mxu0 0.0
  %323 = vmatpush1.msra.mxu0 0.0
  %324 = vmatprep.subr.mxu0 0.0
  %325 = vmatpush1.msra.mxu0 0.0
  %326 = vmatprep.subr.mxu0 0.0
  %327 = vmatpush1.msra.mxu0 0.0
  %328 = vmatprep.subr.mxu0 0.0
  %329 = vmatpush1.msra.mxu0 0.0
  %330 = vmatprep.subr.mxu0 0.0
  %331 = vmatpush1.msra.mxu0 0.0
  %332 = vmatprep.subr.mxu0 0.0
  %333 = vmatpush1.msra.mxu0 0.0
  %334 = vmatprep.subr.mxu0 0.0
  %335 = vmatpush1.msra.mxu0 0.0
  %336 = vmatprep.subr.mxu0 0.0
  %337 = vmatpush1.msra.mxu0 0.0
  %338 = vmatprep.subr.mxu0 0.0
  %339 = vmatpush1.msra.mxu0 0.0
  %340 = vmatprep.subr.mxu0 0.0
  %341 = vmatpush1.msra.mxu0 0.0
  %342 = vmatprep.subr.mxu0 0.0
  %343 = vmatpush1.msra.mxu0 0.0
  %344 = vmatprep.subr.mxu0 0.0
  %345 = vmatpush1.msra.mxu0 0.0
  %346 = vmatprep.subr.mxu0 0.0
  %347 = vmatpush1.msra.mxu0 0.0
  %348 = vmatprep.subr.mxu0 0.0
  %349 = vmatpush1.msra.mxu0 0.0
  %350 = vmatprep.subr.mxu0 0.0
  %351 = vmatpush1.msra.mxu0 0.0
  %352 = vmatprep.subr.mxu0 0.0
  %353 = vmatpush1.msra.mxu0 0.0
  %354 = vmatprep.subr.mxu0 0.0
  %355 = vmatpush1.msra.mxu0 0.0
  %356 = vmatprep.subr.mxu0 0.0
  %357 = vmatpush1.msra.mxu0 0.0
  %358 = vmatprep.subr.mxu0 0.0
  %359 = vmatpush1.msra.mxu0 0.0
  %360 = vmatprep.subr.mxu0 0.0
  %361 = vmatpush1.msra.mxu0 0.0
  %362 = vmatprep.subr.mxu0 0.0
  %363 = vmatpush1.msra.mxu0 0.0
  %364 = vmatprep.subr.mxu0 0.0
  %365 = vmatpush1.msra.mxu0 0.0
  %366 = vmatprep.subr.mxu0 0.0
  %367 = vmatpush1.msra.mxu0 0.0
  %368 = vmatprep.subr.mxu0 0.0
  %369 = vmatpush1.msra.mxu0 0.0
  %370 = vmatprep.subr.mxu0 0.0
  %371 = vmatpush1.msra.mxu0 0.0
  %372 = vmatprep.mubr.f32.mxu0 0.0
  %373 = vmatmul.mubr.f32.gmra.mrb[0].mxu0 %v306
  %v374 = vpop.f32.mrb[0].mxu0
  %v375 = vadd.f32 0.0, %v374
  %v376 = vpop.f32.mrb[0].mxu0
  %377 = vdwg.mxu0
  %v378 = vadd.f32 %v305, %v375
  %v379 = vxor.u32 %v378, 2147483648
  %v380 = vmul.f32 %v379, 1.442695
  %v381 = vpow.pop %v380
  %v382 = vadd.f32 %v381, 1.0
  %v383 = vrcp.pop %v382
  %v384 = vmul.f32 1.0, %v383
  %v385 = vtanh.pop %v378
  %387 = vrot.lane.b32.xlu0 %v290, 32
  %v388 = vpop.permute.xlu0 %387
  %v390 = vmul.f32 %v384, %v388
  %392 = vrot.lane.b32.xlu0 %v385, 32
  %v393 = vpop.permute.xlu0 %392
  %v395 = vmul.f32 %v384, %v393
  %397 = vrot.lane.b32.xlu0 %v395, 32
  %v398 = vpop.permute.xlu0 %397
  %v400 = vadd.f32 %v390, %v398
  %v401 = vtanh.pop %v400
  %403 = vrot.lane.b32.xlu0 %v401, 32
  %v404 = vpop.permute.xlu0 %403
  %v406 = vmul.f32 %v384, %v404
  %s407 = scalar_lea.vmem %s1, 8
  %v408 = vld [vmem:[%s407] sm:$0xff]
  %v409 = vsub.f32 %v400, %v388
  %411 = vrot.lane.b32.xlu0 %v409, 96
  %v412 = vpop.permute.xlu0 %411
  %v414 = vmul.f32 %v408, %v412
  %v415 = vadd.f32 %v290, %v414
  %416 = vrot.lane.b32.xlu0 %v296, 64
  %v417 = vpop.permute.xlu0 %416
  %v419 = vsub.f32 %v406, %v417
  %421 = vrot.lane.b32.xlu0 %v419, 64
  %v422 = vpop.permute.xlu0 %421
  %v424 = vmul.f32 %v408, %v422
  %v425 = vadd.f32 %v296, %v424
  %427 = vrot.lane.b32.xlu0 %v425, 32
  %v428 = vpop.permute.xlu0 %427
  %vm430 = vcmask 392448
  %431 = vst.msk [vmem:[#allocation2] sm:$0xff] %vm430, %v428
  %vm432 = vcmask 261248
  %433 = vst.msk [vmem:[#allocation2 + $0x8] sm:$0xff] %vm432, %v425
  %v434 = vsel %vm183, %v145, %v150
  %v435 = vsel %vm185, %v425, 0
  %437 = vmatprep.subr.mxu0 0.0
  %438 = vmatpush1.msra.mxu0 %v163
  %439 = vmatprep.subr.mxu0 0.0
  %440 = vmatpush1.msra.mxu0 %v164
  %441 = vmatprep.subr.mxu0 0.0
  %442 = vmatpush1.msra.mxu0 %v165
  %443 = vmatprep.subr.mxu0 0.0
  %444 = vmatpush1.msra.mxu0 %v166
  %445 = vmatprep.subr.mxu0 0.0
  %446 = vmatpush1.msra.mxu0 0.0
  %447 = vmatprep.subr.mxu0 0.0
  %448 = vmatpush1.msra.mxu0 0.0
  %449 = vmatprep.subr.mxu0 0.0
  %450 = vmatpush1.msra.mxu0 0.0
  %451 = vmatprep.subr.mxu0 0.0
  %452 = vmatpush1.msra.mxu0 0.0
  %453 = vmatprep.subr.mxu0 0.0
  %454 = vmatpush1.msra.mxu0 0.0
  %455 = vmatprep.subr.mxu0 0.0
  %456 = vmatpush1.msra.mxu0 0.0
  %457 = vmatprep.subr.mxu0 0.0
  %458 = vmatpush1.msra.mxu0 0.0
  %459 = vmatprep.subr.mxu0 0.0
  %460 = vmatpush1.msra.mxu0 0.0
  %461 = vmatprep.subr.mxu0 0.0
  %462 = vmatpush1.msra.mxu0 0.0
  %463 = vmatprep.subr.mxu0 0.0
  %464 = vmatpush1.msra.mxu0 0.0
  %465 = vmatprep.subr.mxu0 0.0
  %466 = vmatpush1.msra.mxu0 0.0
  %467 = vmatprep.subr.mxu0 0.0
  %468 = vmatpush1.msra.mxu0 0.0
  %469 = vmatprep.subr.mxu0 0.0
  %470 = vmatpush1.msra.mxu0 0.0
  %471 = vmatprep.subr.mxu0 0.0
  %472 = vmatpush1.msra.mxu0 0.0
  %473 = vmatprep.subr.mxu0 0.0
  %474 = vmatpush1.msra.mxu0 0.0
  %475 = vmatprep.subr.mxu0 0.0
  %476 = vmatpush1.msra.mxu0 0.0
  %477 = vmatprep.subr.mxu0 0.0
  %478 = vmatpush1.msra.mxu0 0.0
  %479 = vmatprep.subr.mxu0 0.0
  %480 = vmatpush1.msra.mxu0 0.0
  %481 = vmatprep.subr.mxu0 0.0
  %482 = vmatpush1.msra.mxu0 0.0
  %483 = vmatprep.subr.mxu0 0.0
  %484 = vmatpush1.msra.mxu0 0.0
  %485 = vmatprep.subr.mxu0 0.0
  %486 = vmatpush1.msra.mxu0 0.0
  %487 = vmatprep.subr.mxu0 0.0
  %488 = vmatpush1.msra.mxu0 0.0
  %489 = vmatprep.subr.mxu0 0.0
  %490 = vmatpush1.msra.mxu0 0.0
  %491 = vmatprep.subr.mxu0 0.0
  %492 = vmatpush1.msra.mxu0 0.0
  %493 = vmatprep.subr.mxu0 0.0
  %494 = vmatpush1.msra.mxu0 0.0
  %495 = vmatprep.subr.mxu0 0.0
  %496 = vmatpush1.msra.mxu0 0.0
  %497 = vmatprep.subr.mxu0 0.0
  %498 = vmatpush1.msra.mxu0 0.0
  %499 = vmatprep.subr.mxu0 0.0
  %500 = vmatpush1.msra.mxu0 0.0
  %501 = vmatprep.mubr.f32.mxu0 0.0
  %502 = vmatmul.mubr.f32.gmra.mrb[0].mxu0 %v435
  %v503 = vpop.f32.mrb[0].mxu0
  %v504 = vadd.f32 0.0, %v503
  %v505 = vpop.f32.mrb[0].mxu0
  %506 = vdwg.mxu0
  %v507 = vadd.f32 %v434, %v504
  %v508 = vxor.u32 %v507, 2147483648
  %v509 = vmul.f32 %v508, 1.442695
  %v510 = vpow.pop %v509
  %v511 = vadd.f32 %v510, 1.0
  %v512 = vrcp.pop %v511
  %v513 = vmul.f32 1.0, %v512
  %v514 = vtanh.pop %v507
  %516 = vrot.lane.b32.xlu0 %v415, 32
  %v517 = vpop.permute.xlu0 %516
  %v519 = vmul.f32 %v513, %v517
  %521 = vrot.lane.b32.xlu0 %v514, 32
  %v522 = vpop.permute.xlu0 %521
  %v524 = vmul.f32 %v513, %v522
  %526 = vrot.lane.b32.xlu0 %v524, 32
  %v527 = vpop.permute.xlu0 %526
  %v529 = vadd.f32 %v519, %v527
  %v530 = vtanh.pop %v529
  %532 = vrot.lane.b32.xlu0 %v530, 32
  %v533 = vpop.permute.xlu0 %532
  %v535 = vmul.f32 %v513, %v533
  %s536 = scalar_lea.vmem %s1, 16
  %v537 = vld [vmem:[%s536] sm:$0xff]
  %v538 = vsub.f32 %v529, %v517
  %540 = vrot.lane.b32.xlu0 %v538, 96
  %v541 = vpop.permute.xlu0 %540
  %v543 = vmul.f32 %v537, %v541
  %v544 = vadd.f32 %v415, %v543
  %545 = vrot.lane.b32.xlu0 %v425, 64
  %v546 = vpop.permute.xlu0 %545
  %v548 = vsub.f32 %v535, %v546
  %550 = vrot.lane.b32.xlu0 %v548, 64
  %v551 = vpop.permute.xlu0 %550
  %v553 = vmul.f32 %v537, %v551
  %v554 = vadd.f32 %v425, %v553
  %556 = vrot.lane.b32.xlu0 %v554, 64
  %v557 = vpop.permute.xlu0 %556
  %vm559 = vcmask 654848
  %560 = vst.msk [vmem:[#allocation2] sm:$0xff] %vm559, %v557
  %561 = vrot.lane.b32.xlu0 %v554, 96
  %v562 = vpop.permute.xlu0 %561
  %vm564 = vcmask 1048448
  %565 = vst.msk [vmem:[#allocation2] sm:$0xff] %vm564, %v562
  %v566 = vsel %vm183, %v150, %v145
  %v567 = vsel %vm185, %v554, 0
  %569 = vmatprep.subr.mxu0 0.0
  %570 = vmatpush1.msra.mxu0 %v163
  %571 = vmatprep.subr.mxu0 0.0
  %572 = vmatpush1.msra.mxu0 %v164
  %573 = vmatprep.subr.mxu0 0.0
  %574 = vmatpush1.msra.mxu0 %v165
  %575 = vmatprep.subr.mxu0 0.0
  %576 = vmatpush1.msra.mxu0 %v166
  %577 = vmatprep.subr.mxu0 0.0
  %578 = vmatpush1.msra.mxu0 0.0
  %579 = vmatprep.subr.mxu0 0.0
  %580 = vmatpush1.msra.mxu0 0.0
  %581 = vmatprep.subr.mxu0 0.0
  %582 = vmatpush1.msra.mxu0 0.0
  %583 = vmatprep.subr.mxu0 0.0
  %584 = vmatpush1.msra.mxu0 0.0
  %585 = vmatprep.subr.mxu0 0.0
  %586 = vmatpush1.msra.mxu0 0.0
  %587 = vmatprep.subr.mxu0 0.0
  %588 = vmatpush1.msra.mxu0 0.0
  %589 = vmatprep.subr.mxu0 0.0
  %590 = vmatpush1.msra.mxu0 0.0
  %591 = vmatprep.subr.mxu0 0.0
  %592 = vmatpush1.msra.mxu0 0.0
  %593 = vmatprep.subr.mxu0 0.0
  %594 = vmatpush1.msra.mxu0 0.0
  %595 = vmatprep.subr.mxu0 0.0
  %596 = vmatpush1.msra.mxu0 0.0
  %597 = vmatprep.subr.mxu0 0.0
  %598 = vmatpush1.msra.mxu0 0.0
  %599 = vmatprep.subr.mxu0 0.0
  %600 = vmatpush1.msra.mxu0 0.0
  %601 = vmatprep.subr.mxu0 0.0
  %602 = vmatpush1.msra.mxu0 0.0
  %603 = vmatprep.subr.mxu0 0.0
  %604 = vmatpush1.msra.mxu0 0.0
  %605 = vmatprep.subr.mxu0 0.0
  %606 = vmatpush1.msra.mxu0 0.0
  %607 = vmatprep.subr.mxu0 0.0
  %608 = vmatpush1.msra.mxu0 0.0
  %609 = vmatprep.subr.mxu0 0.0
  %610 = vmatpush1.msra.mxu0 0.0
  %611 = vmatprep.subr.mxu0 0.0
  %612 = vmatpush1.msra.mxu0 0.0
  %613 = vmatprep.subr.mxu0 0.0
  %614 = vmatpush1.msra.mxu0 0.0
  %615 = vmatprep.subr.mxu0 0.0
  %616 = vmatpush1.msra.mxu0 0.0
  %617 = vmatprep.subr.mxu0 0.0
  %618 = vmatpush1.msra.mxu0 0.0
  %619 = vmatprep.subr.mxu0 0.0
  %620 = vmatpush1.msra.mxu0 0.0
  %621 = vmatprep.subr.mxu0 0.0
  %622 = vmatpush1.msra.mxu0 0.0
  %623 = vmatprep.subr.mxu0 0.0
  %624 = vmatpush1.msra.mxu0 0.0
  %625 = vmatprep.subr.mxu0 0.0
  %626 = vmatpush1.msra.mxu0 0.0
  %627 = vmatprep.subr.mxu0 0.0
  %628 = vmatpush1.msra.mxu0 0.0
  %629 = vmatprep.subr.mxu0 0.0
  %630 = vmatpush1.msra.mxu0 0.0
  %631 = vmatprep.subr.mxu0 0.0
  %632 = vmatpush1.msra.mxu0 0.0
  %633 = vmatprep.mubr.f32.mxu0 0.0
  %634 = vmatmul.mubr.f32.gmra.mrb[0].mxu0 %v567
  %v635 = vpop.f32.mrb[0].mxu0
  %v636 = vadd.f32 0.0, %v635
  %v637 = vpop.f32.mrb[0].mxu0
  %638 = vdwg.mxu0
  %v639 = vadd.f32 %v566, %v636
  %v640 = vxor.u32 %v639, 2147483648
  %v641 = vmul.f32 %v640, 1.442695
  %v642 = vpow.pop %v641
  %v643 = vadd.f32 %v642, 1.0
  %v644 = vrcp.pop %v643
  %v645 = vmul.f32 1.0, %v644
  %v646 = vtanh.pop %v639
  %648 = vrot.lane.b32.xlu0 %v544, 32
  %v649 = vpop.permute.xlu0 %648
  %v651 = vmul.f32 %v645, %v649
  %653 = vrot.lane.b32.xlu0 %v646, 32
  %v654 = vpop.permute.xlu0 %653
  %v656 = vmul.f32 %v645, %v654
  %658 = vrot.lane.b32.xlu0 %v656, 32
  %v659 = vpop.permute.xlu0 %658
  %v661 = vadd.f32 %v651, %v659
  %v662 = vtanh.pop %v661
  %664 = vrot.lane.b32.xlu0 %v662, 32
  %v665 = vpop.permute.xlu0 %664
  %v667 = vmul.f32 %v645, %v665
  %s668 = scalar_lea.vmem %s1, 24
  %v669 = vld [vmem:[%s668] sm:$0xff]
  %v670 = vsub.f32 %v661, %v649
  %672 = vrot.lane.b32.xlu0 %v670, 96
  %v673 = vpop.permute.xlu0 %672
  %v675 = vmul.f32 %v669, %v673
  %v676 = vadd.f32 %v544, %v675
  %v677 = vsub.f32 %v667, %v557
  %679 = vrot.lane.b32.xlu0 %v677, 64
  %v680 = vpop.permute.xlu0 %679
  %v682 = vmul.f32 %v669, %v680
  %v683 = vadd.f32 %v554, %v682
  %685 = vrot.lane.b32.xlu0 %v683, 96
  %v686 = vpop.permute.xlu0 %685
  %vm688 = vcmask 917248
  %689 = vst.msk [vmem:[#allocation2] sm:$0xff] %vm688, %v686
  %690 = vrot.lane.b32.xlu0 %v683, 64
  %v691 = vpop.permute.xlu0 %690
  %vm693 = vcmask 786048
  %694 = vst.msk [vmem:[#allocation2] sm:$0xff] %vm693, %v691
  %v695 = vsel %vm183, %v155, %v140
  %v696 = vsel %vm185, %v683, 0
  %698 = vmatprep.subr.mxu0 0.0
  %699 = vmatpush1.msra.mxu0 %v163
  %700 = vmatprep.subr.mxu0 0.0
  %701 = vmatpush1.msra.mxu0 %v164
  %702 = vmatprep.subr.mxu0 0.0
  %703 = vmatpush1.msra.mxu0 %v165
  %704 = vmatprep.subr.mxu0 0.0
  %705 = vmatpush1.msra.mxu0 %v166
  %706 = vmatprep.subr.mxu0 0.0
  %707 = vmatpush1.msra.mxu0 0.0
  %708 = vmatprep.subr.mxu0 0.0
  %709 = vmatpush1.msra.mxu0 0.0
  %710 = vmatprep.subr.mxu0 0.0
  %711 = vmatpush1.msra.mxu0 0.0
  %712 = vmatprep.subr.mxu0 0.0
  %713 = vmatpush1.msra.mxu0 0.0
  %714 = vmatprep.subr.mxu0 0.0
  %715 = vmatpush1.msra.mxu0 0.0
  %716 = vmatprep.subr.mxu0 0.0
  %717 = vmatpush1.msra.mxu0 0.0
  %718 = vmatprep.subr.mxu0 0.0
  %719 = vmatpush1.msra.mxu0 0.0
  %720 = vmatprep.subr.mxu0 0.0
  %721 = vmatpush1.msra.mxu0 0.0
  %722 = vmatprep.subr.mxu0 0.0
  %723 = vmatpush1.msra.mxu0 0.0
  %724 = vmatprep.subr.mxu0 0.0
  %725 = vmatpush1.msra.mxu0 0.0
  %726 = vmatprep.subr.mxu0 0.0
  %727 = vmatpush1.msra.mxu0 0.0
  %728 = vmatprep.subr.mxu0 0.0
  %729 = vmatpush1.msra.mxu0 0.0
  %730 = vmatprep.subr.mxu0 0.0
  %731 = vmatpush1.msra.mxu0 0.0
  %732 = vmatprep.subr.mxu0 0.0
  %733 = vmatpush1.msra.mxu0 0.0
  %734 = vmatprep.subr.mxu0 0.0
  %735 = vmatpush1.msra.mxu0 0.0
  %736 = vmatprep.subr.mxu0 0.0
  %737 = vmatpush1.msra.mxu0 0.0
  %738 = vmatprep.subr.mxu0 0.0
  %739 = vmatpush1.msra.mxu0 0.0
  %740 = vmatprep.subr.mxu0 0.0
  %741 = vmatpush1.msra.mxu0 0.0
  %742 = vmatprep.subr.mxu0 0.0
  %743 = vmatpush1.msra.mxu0 0.0
  %744 = vmatprep.subr.mxu0 0.0
  %745 = vmatpush1.msra.mxu0 0.0
  %746 = vmatprep.subr.mxu0 0.0
  %747 = vmatpush1.msra.mxu0 0.0
  %748 = vmatprep.subr.mxu0 0.0
  %749 = vmatpush1.msra.mxu0 0.0
  %750 = vmatprep.subr.mxu0 0.0
  %751 = vmatpush1.msra.mxu0 0.0
  %752 = vmatprep.subr.mxu0 0.0
  %753 = vmatpush1.msra.mxu0 0.0
  %754 = vmatprep.subr.mxu0 0.0
  %755 = vmatpush1.msra.mxu0 0.0
  %756 = vmatprep.subr.mxu0 0.0
  %757 = vmatpush1.msra.mxu0 0.0
  %758 = vmatprep.subr.mxu0 0.0
  %759 = vmatpush1.msra.mxu0 0.0
  %760 = vmatprep.subr.mxu0 0.0
  %761 = vmatpush1.msra.mxu0 0.0
  %762 = vmatprep.mubr.f32.mxu0 0.0
  %763 = vmatmul.mubr.f32.gmra.mrb[0].mxu0 %v696
  %v764 = vpop.f32.mrb[0].mxu0
  %v765 = vadd.f32 0.0, %v764
  %v766 = vpop.f32.mrb[0].mxu0
  %767 = vdwg.mxu0
  %v768 = vadd.f32 %v695, %v765
  %v769 = vxor.u32 %v768, 2147483648
  %v770 = vmul.f32 %v769, 1.442695
  %v771 = vpow.pop %v770
  %v772 = vadd.f32 %v771, 1.0
  %v773 = vrcp.pop %v772
  %v774 = vmul.f32 1.0, %v773
  %v775 = vtanh.pop %v768
  %777 = vrot.lane.b32.xlu0 %v676, 32
  %v778 = vpop.permute.xlu0 %777
  %v780 = vmul.f32 %v774, %v778
  %782 = vrot.lane.b32.xlu0 %v775, 32
  %v783 = vpop.permute.xlu0 %782
  %v785 = vmul.f32 %v774, %v783
  %787 = vrot.lane.b32.xlu0 %v785, 32
  %v788 = vpop.permute.xlu0 %787
  %v790 = vadd.f32 %v780, %v788
  %v791 = vtanh.pop %v790
  %793 = vrot.lane.b32.xlu0 %v791, 32
  %v794 = vpop.permute.xlu0 %793
  %v796 = vmul.f32 %v774, %v794
  %s797 = scalar_lea.vmem %s1, 32
  %v798 = vld [vmem:[%s797] sm:$0xff]
  %v799 = vsub.f32 %v790, %v778
  %801 = vrot.lane.b32.xlu0 %v799, 96
  %v802 = vpop.permute.xlu0 %801
  %v804 = vmul.f32 %v798, %v802
  %v805 = vadd.f32 %v676, %v804
  %v806 = vsub.f32 %v796, %v691
  %808 = vrot.lane.b32.xlu0 %v806, 64
  %v809 = vpop.permute.xlu0 %808
  %v811 = vmul.f32 %v798, %v809
  %v812 = vadd.f32 %v683, %v811
  %813 = vst.msk [vmem:[#allocation2 + $0x8] sm:$0xff] %vm297, %v812
  %815 = vrot.lane.b32.xlu0 %v812, 32
  %v816 = vpop.permute.xlu0 %815
  %818 = vst.msk [vmem:[#allocation2] sm:$0xff] %vm303, %v816
  %v819 = vsel %vm183, %v160, %v135
  %v820 = vsel %vm185, %v812, 0
  %822 = vmatprep.subr.mxu0 0.0
  %823 = vmatpush1.msra.mxu0 %v163
  %824 = vmatprep.subr.mxu0 0.0
  %825 = vmatpush1.msra.mxu0 %v164
  %826 = vmatprep.subr.mxu0 0.0
  %827 = vmatpush1.msra.mxu0 %v165
  %828 = vmatprep.subr.mxu0 0.0
  %829 = vmatpush1.msra.mxu0 %v166
  %830 = vmatprep.subr.mxu0 0.0
  %831 = vmatpush1.msra.mxu0 0.0
  %832 = vmatprep.subr.mxu0 0.0
  %833 = vmatpush1.msra.mxu0 0.0
  %834 = vmatprep.subr.mxu0 0.0
  %835 = vmatpush1.msra.mxu0 0.0
  %836 = vmatprep.subr.mxu0 0.0
  %837 = vmatpush1.msra.mxu0 0.0
  %838 = vmatprep.subr.mxu0 0.0
  %839 = vmatpush1.msra.mxu0 0.0
  %840 = vmatprep.subr.mxu0 0.0
  %841 = vmatpush1.msra.mxu0 0.0
  %842 = vmatprep.subr.mxu0 0.0
  %843 = vmatpush1.msra.mxu0 0.0
  %844 = vmatprep.subr.mxu0 0.0
  %845 = vmatpush1.msra.mxu0 0.0
  %846 = vmatprep.subr.mxu0 0.0
  %847 = vmatpush1.msra.mxu0 0.0
  %848 = vmatprep.subr.mxu0 0.0
  %849 = vmatpush1.msra.mxu0 0.0
  %850 = vmatprep.subr.mxu0 0.0
  %851 = vmatpush1.msra.mxu0 0.0
  %852 = vmatprep.subr.mxu0 0.0
  %853 = vmatpush1.msra.mxu0 0.0
  %854 = vmatprep.subr.mxu0 0.0
  %855 = vmatpush1.msra.mxu0 0.0
  %856 = vmatprep.subr.mxu0 0.0
  %857 = vmatpush1.msra.mxu0 0.0
  %858 = vmatprep.subr.mxu0 0.0
  %859 = vmatpush1.msra.mxu0 0.0
  %860 = vmatprep.subr.mxu0 0.0
  %861 = vmatpush1.msra.mxu0 0.0
  %862 = vmatprep.subr.mxu0 0.0
  %863 = vmatpush1.msra.mxu0 0.0
  %864 = vmatprep.subr.mxu0 0.0
  %865 = vmatpush1.msra.mxu0 0.0
  %866 = vmatprep.subr.mxu0 0.0
  %867 = vmatpush1.msra.mxu0 0.0
  %868 = vmatprep.subr.mxu0 0.0
  %869 = vmatpush1.msra.mxu0 0.0
  %870 = vmatprep.subr.mxu0 0.0
  %871 = vmatpush1.msra.mxu0 0.0
  %872 = vmatprep.subr.mxu0 0.0
  %873 = vmatpush1.msra.mxu0 0.0
  %874 = vmatprep.subr.mxu0 0.0
  %875 = vmatpush1.msra.mxu0 0.0
  %876 = vmatprep.subr.mxu0 0.0
  %877 = vmatpush1.msra.mxu0 0.0
  %878 = vmatprep.subr.mxu0 0.0
  %879 = vmatpush1.msra.mxu0 0.0
  %880 = vmatprep.subr.mxu0 0.0
  %881 = vmatpush1.msra.mxu0 0.0
  %882 = vmatprep.subr.mxu0 0.0
  %883 = vmatpush1.msra.mxu0 0.0
  %884 = vmatprep.subr.mxu0 0.0
  %885 = vmatpush1.msra.mxu0 0.0
  %886 = vmatprep.mubr.f32.mxu0 0.0
  %887 = vmatmul.mubr.f32.gmra.mrb[0].mxu0 %v820
  %v888 = vpop.f32.mrb[0].mxu0
  %v889 = vadd.f32 0.0, %v888
  %v890 = vpop.f32.mrb[0].mxu0
  %891 = vdwg.mxu0
  %v892 = vadd.f32 %v819, %v889
  %v893 = vxor.u32 %v892, 2147483648
  %v894 = vmul.f32 %v893, 1.442695
  %v895 = vpow.pop %v894
  %v896 = vadd.f32 %v895, 1.0
  %v897 = vrcp.pop %v896
  %v898 = vmul.f32 1.0, %v897
  %v899 = vtanh.pop %v892
  %901 = vrot.lane.b32.xlu0 %v805, 32
  %v902 = vpop.permute.xlu0 %901
  %v904 = vmul.f32 %v898, %v902
  %906 = vrot.lane.b32.xlu0 %v899, 32
  %v907 = vpop.permute.xlu0 %906
  %v909 = vmul.f32 %v898, %v907
  %911 = vrot.lane.b32.xlu0 %v909, 32
  %v912 = vpop.permute.xlu0 %911
  %v914 = vadd.f32 %v904, %v912
  %v915 = vtanh.pop %v914
  %917 = vrot.lane.b32.xlu0 %v915, 32
  %v918 = vpop.permute.xlu0 %917
  %v920 = vmul.f32 %v898, %v918
  %s921 = scalar_lea.vmem %s1, 40
  %v922 = vld [vmem:[%s921] sm:$0xff]
  %923 = vrot.lane.b32.xlu0 %v812, 64
  %v924 = vpop.permute.xlu0 %923
  %v926 = vsub.f32 %v920, %v924
  %928 = vrot.lane.b32.xlu0 %v926, 64
  %v929 = vpop.permute.xlu0 %928
  %v931 = vmul.f32 %v922, %v929
  %v932 = vadd.f32 %v812, %v931
  %934 = vrot.lane.b32.xlu0 %v932, 32
  %v935 = vpop.permute.xlu0 %934
  %937 = vst.msk [vmem:[#allocation2 + $0x8] sm:$0xff] %vm430, %v935
  %938 = vst.msk [vmem:[#allocation2] sm:$0xff] %vm432, %v932
  %v939 = vld [vmem:[#allocation2] sm:$0xff]
  %v940 = vld [vmem:[#allocation2 + $0x8] sm:$0xff]
  %v941 = vld [vmem:[%s2] sm:$0xff]
  %v942 = vld [vmem:[%s2 + $0x8] sm:$0xff]
  %v943 = vmul.f32 %v939, %v941
  %v944 = vmul.f32 %v940, %v942
  %v945 = vld [vmem:[%s6] sm:$0xff]
  %v946 = vld [vmem:[%s6 + $0x8] sm:$0xff]
  %v947 = vld [vmem:[%s6 + $0x10] sm:$0xff]
  %v948 = vld [vmem:[%s6 + $0x18] sm:$0xff]
  %v949 = vld [vmem:[%s6 + $0x20] sm:$0xff]
  %v950 = vld [vmem:[%s6 + $0x28] sm:$0xff]
  %v951 = vld [vmem:[%s6 + $0x30] sm:$0xff]
  %v952 = vld [vmem:[%s6 + $0x38] sm:$0xff]
  %v953 = vld [vmem:[%s6 + $0x40] sm:$0xff]
  %v954 = vld [vmem:[%s6 + $0x48] sm:$0xff]
  %v955 = vld [vmem:[%s6 + $0x50] sm:$0xff]
  %v956 = vld [vmem:[%s6 + $0x58] sm:$0xff]
  %v957 = vld [vmem:[%s6 + $0x60] sm:$0xff]
  %v958 = vld [vmem:[%s6 + $0x68] sm:$0xff]
  %v959 = vld [vmem:[%s6 + $0x70] sm:$0xff]
  %v960 = vld [vmem:[%s6 + $0x78] sm:$0xff]
  %v961 = vld [vmem:[%s6 + $0x80] sm:$0xff]
  %v962 = vld [vmem:[%s6 + $0x88] sm:$0xff]
  %v963 = vld [vmem:[%s6 + $0x90] sm:$0xff]
  %v964 = vld [vmem:[%s6 + $0x98] sm:$0xff]
  %v965 = vld [vmem:[%s6 + $0xa0] sm:$0xff]
  %v966 = vld [vmem:[%s6 + $0xa8] sm:$0xff]
  %v967 = vld [vmem:[%s6 + $0xb0] sm:$0xff]
  %v968 = vld [vmem:[%s6 + $0xb8] sm:$0xff]
  %v969 = vld [vmem:[%s9] sm:$0x1]
  %v970 = vlaneseq
  %v971 = vshrl.u32 %v970, 7
  %v972 = vsub.s32 0, %v971
  %v973 = vrot.slane %v969, %v972
  %vm974 = vcmask 523264
  %v976 = vsel %vm974, %v944, 0
  %978 = vmatprep.subr.mxu0 0.0
  %979 = vmatpush1.msra.mxu0 %v945
  %980 = vmatprep.subr.mxu0 0.0
  %981 = vmatpush1.msra.mxu0 %v946
  %982 = vmatprep.subr.mxu0 0.0
  %983 = vmatpush1.msra.mxu0 %v947
  %984 = vmatprep.subr.mxu0 0.0
  %985 = vmatpush1.msra.mxu0 %v948
  %986 = vmatprep.subr.mxu0 0.0
  %987 = vmatpush1.msra.mxu0 %v949
  %988 = vmatprep.subr.mxu0 0.0
  %989 = vmatpush1.msra.mxu0 %v950
  %990 = vmatprep.subr.mxu0 0.0
  %991 = vmatpush1.msra.mxu0 %v951
  %992 = vmatprep.subr.mxu0 0.0
  %993 = vmatpush1.msra.mxu0 %v952
  %994 = vmatprep.subr.mxu0 0.0
  %995 = vmatpush1.msra.mxu0 %v953
  %996 = vmatprep.subr.mxu0 0.0
  %997 = vmatpush1.msra.mxu0 %v954
  %998 = vmatprep.subr.mxu0 0.0
  %999 = vmatpush1.msra.mxu0 %v955
  %1000 = vmatprep.subr.mxu0 0.0
  %1001 = vmatpush1.msra.mxu0 %v956
  %1002 = vmatprep.subr.mxu0 0.0
  %1003 = vmatpush1.msra.mxu0 %v957
  %1004 = vmatprep.subr.mxu0 0.0
  %1005 = vmatpush1.msra.mxu0 %v958
  %1006 = vmatprep.subr.mxu0 0.0
  %1007 = vmatpush1.msra.mxu0 %v959
  %1008 = vmatprep.subr.mxu0 0.0
  %1009 = vmatpush1.msra.mxu0 %v960
  %1010 = vmatprep.subr.mxu0 0.0
  %1011 = vmatpush1.msra.mxu0 %v961
  %1012 = vmatprep.subr.mxu0 0.0
  %1013 = vmatpush1.msra.mxu0 %v962
  %1014 = vmatprep.subr.mxu0 0.0
  %1015 = vmatpush1.msra.mxu0 %v963
  %1016 = vmatprep.subr.mxu0 0.0
  %1017 = vmatpush1.msra.mxu0 %v964
  %1018 = vmatprep.subr.mxu0 0.0
  %1019 = vmatpush1.msra.mxu0 %v965
  %1020 = vmatprep.subr.mxu0 0.0
  %1021 = vmatpush1.msra.mxu0 %v966
  %1022 = vmatprep.subr.mxu0 0.0
  %1023 = vmatpush1.msra.mxu0 %v967
  %1024 = vmatprep.subr.mxu0 0.0
  %1025 = vmatpush1.msra.mxu0 %v968
  %1026 = vmatprep.subr.mxu0 0.0
  %1027 = vmatpush1.msra.mxu0 0.0
  %1028 = vmatprep.subr.mxu0 0.0
  %1029 = vmatpush1.msra.mxu0 0.0
  %1030 = vmatprep.subr.mxu0 0.0
  %1031 = vmatpush1.msra.mxu0 0.0
  %1032 = vmatprep.subr.mxu0 0.0
  %1033 = vmatpush1.msra.mxu0 0.0
  %1034 = vmatprep.subr.mxu0 0.0
  %1035 = vmatpush1.msra.mxu0 0.0
  %1036 = vmatprep.subr.mxu0 0.0
  %1037 = vmatpush1.msra.mxu0 0.0
  %1038 = vmatprep.subr.mxu0 0.0
  %1039 = vmatpush1.msra.mxu0 0.0
  %1040 = vmatprep.subr.mxu0 0.0
  %1041 = vmatpush1.msra.mxu0 0.0
  %1042 = vmatprep.mubr.f32.mxu0 %v976
  %1043 = vmatmul.mubr.f32.gmra.mrb[0].mxu0 %v943
  %v1044 = vpop.f32.mrb[0].mxu0
  %v1045 = vadd.f32 %v973, %v1044
  %v1046 = vpop.f32.mrb[0].mxu0
  %1047 = vdwg.mxu0
  %vm1048 = vcmp.gt.f32.partialorder %v1045, 0.0
  %v1049 = vmul.f32 %v1045, 0.2
  %v1050 = vsel %vm1048, %v1045, %v1049
  %v1051 = vld [vmem:[%s3] sm:$0x1]
  %v1053 = vlaneseq
  %v1054 = vshrl.u32 %v1053, 7
  %v1055 = vsub.s32 0, %v1054
  %v1056 = vrot.slane %v1051, %v1055
  %v1058 = vmul.f32 %v1050, %v1056
  %v1059 = vld [vmem:[%s7] sm:$0xff]
  %v1060 = vld [vmem:[%s7 + $0x8] sm:$0xff]
  %v1061 = vld [vmem:[%s7 + $0x10] sm:$0xff]
  %v1062 = vld [vmem:[%s7 + $0x18] sm:$0xff]
  %v1063 = vld [vmem:[%s7 + $0x20] sm:$0xff]
  %v1064 = vld [vmem:[%s7 + $0x28] sm:$0xff]
  %v1065 = vld [vmem:[%s7 + $0x30] sm:$0xff]
  %v1066 = vld [vmem:[%s7 + $0x38] sm:$0xff]
  %v1067 = vld [vmem:[%s7 + $0x40] sm:$0xff]
  %v1068 = vld [vmem:[%s7 + $0x48] sm:$0xff]
  %v1069 = vld [vmem:[%s7 + $0x50] sm:$0xff]
  %v1070 = vld [vmem:[%s7 + $0x58] sm:$0xff]
  %v1071 = vld [vmem:[%s7 + $0x60] sm:$0xff]
  %v1072 = vld [vmem:[%s7 + $0x68] sm:$0xff]
  %v1073 = vld [vmem:[%s7 + $0x70] sm:$0xff]
  %v1074 = vld [vmem:[%s7 + $0x78] sm:$0xff]
  %s1075 = scalar_lea.vmem %s9, 1
  %v1076 = vld [vmem:[%s1075] ss:$4 sm:$0x3]
  %v1078 = vlaneseq
  %v1079 = vshrl.u32 %v1078, 7
  %v1080 = vsub.s32 0, %v1079
  %v1081 = vrot.slane %v1076, %v1080
  %v1082 = vlaneseq
  %v1083 = vshrl.u32 %v1082, 7
  %v1084 = vsub.s32 1, %v1083
  %v1085 = vrot.slane %v1076, %v1084
  %v1089 = vsel %vm974, %v1058, 0
  %1091 = vmatprep.subr.mxu0 %v1060
  %1092 = vmatpush1.msra.mxu0 %v1059
  %1093 = vmatprep.subr.mxu0 %v1062
  %1094 = vmatpush1.msra.mxu0 %v1061
  %1095 = vmatprep.subr.mxu0 %v1064
  %1096 = vmatpush1.msra.mxu0 %v1063
  %1097 = vmatprep.subr.mxu0 %v1066
  %1098 = vmatpush1.msra.mxu0 %v1065
  %1099 = vmatprep.subr.mxu0 %v1068
  %1100 = vmatpush1.msra.mxu0 %v1067
  %1101 = vmatprep.subr.mxu0 %v1070
  %1102 = vmatpush1.msra.mxu0 %v1069
  %1103 = vmatprep.subr.mxu0 %v1072
  %1104 = vmatpush1.msra.mxu0 %v1071
  %1105 = vmatprep.subr.mxu0 %v1074
  %1106 = vmatpush1.msra.mxu0 %v1073
  %1107 = vmatprep.subr.mxu0 0.0
  %1108 = vmatpush1.msra.mxu0 0.0
  %1109 = vmatprep.subr.mxu0 0.0
  %1110 = vmatpush1.msra.mxu0 0.0
  %1111 = vmatprep.subr.mxu0 0.0
  %1112 = vmatpush1.msra.mxu0 0.0
  %1113 = vmatprep.subr.mxu0 0.0
  %1114 = vmatpush1.msra.mxu0 0.0
  %1115 = vmatprep.subr.mxu0 0.0
  %1116 = vmatpush1.msra.mxu0 0.0
  %1117 = vmatprep.subr.mxu0 0.0
  %1118 = vmatpush1.msra.mxu0 0.0
  %1119 = vmatprep.subr.mxu0 0.0
  %1120 = vmatpush1.msra.mxu0 0.0
  %1121 = vmatprep.subr.mxu0 0.0
  %1122 = vmatpush1.msra.mxu0 0.0
  %1123 = vmatprep.subr.mxu0 0.0
  %1124 = vmatpush1.msra.mxu0 0.0
  %1125 = vmatprep.subr.mxu0 0.0
  %1126 = vmatpush1.msra.mxu0 0.0
  %1127 = vmatprep.subr.mxu0 0.0
  %1128 = vmatpush1.msra.mxu0 0.0
  %1129 = vmatprep.subr.mxu0 0.0
  %1130 = vmatpush1.msra.mxu0 0.0
  %1131 = vmatprep.subr.mxu0 0.0
  %1132 = vmatpush1.msra.mxu0 0.0
  %1133 = vmatprep.subr.mxu0 0.0
  %1134 = vmatpush1.msra.mxu0 0.0
  %1135 = vmatprep.subr.mxu0 0.0
  %1136 = vmatpush1.msra.mxu0 0.0
  %1137 = vmatprep.subr.mxu0 0.0
  %1138 = vmatpush1.msra.mxu0 0.0
  %1139 = vmatprep.subr.mxu0 0.0
  %1140 = vmatpush1.msra.mxu0 0.0
  %1141 = vmatprep.subr.mxu0 0.0
  %1142 = vmatpush1.msra.mxu0 0.0
  %1143 = vmatprep.subr.mxu0 0.0
  %1144 = vmatpush1.msra.mxu0 0.0
  %1145 = vmatprep.subr.mxu0 0.0
  %1146 = vmatpush1.msra.mxu0 0.0
  %1147 = vmatprep.subr.mxu0 0.0
  %1148 = vmatpush1.msra.mxu0 0.0
  %1149 = vmatprep.subr.mxu0 0.0
  %1150 = vmatpush1.msra.mxu0 0.0
  %1151 = vmatprep.subr.mxu0 0.0
  %1152 = vmatpush1.msra.mxu0 0.0
  %1153 = vmatprep.subr.mxu0 0.0
  %1154 = vmatpush1.msra.mxu0 0.0
  %1155 = vmatprep.mubr.f32.mxu0 0.0
  %1156 = vmatmul.mubr.f32.gmra.mrb[0].mxu0 %v1089
  %v1157 = vpop.f32.mrb[0].mxu0
  %v1158 = vadd.f32 %v1081, %v1157
  %v1159 = vpop.f32.mrb[0].mxu0
  %v1160 = vadd.f32 %v1085, %v1159
  %1161 = vdwg.mxu0
  %vm1162 = vcmp.gt.f32.partialorder %v1158, 0.0
  %vm1163 = vcmp.gt.f32.partialorder %v1160, 0.0
  %v1164 = vmul.f32 %v1158, 0.2
  %v1165 = vmul.f32 %v1160, 0.2
  %v1166 = vsel %vm1162, %v1158, %v1164
  %v1167 = vsel %vm1163, %v1160, %v1165
  %v1168 = vld [vmem:[%s8] sm:$0xff]
  %v1169 = vld [vmem:[%s8 + $0x8] sm:$0xff]
  %v1170 = vld [vmem:[%s8 + $0x10] sm:$0xff]
  %v1171 = vld [vmem:[%s8 + $0x18] sm:$0xff]
  %v1172 = vld [vmem:[%s8 + $0x20] sm:$0xff]
  %v1173 = vld [vmem:[%s8 + $0x28] sm:$0xff]
  %v1174 = vld [vmem:[%s8 + $0x30] sm:$0xff]
  %v1175 = vld [vmem:[%s8 + $0x38] sm:$0xff]
  %v1176 = vld [vmem:[%s8 + $0x40] sm:$0xff]
  %v1177 = vld [vmem:[%s8 + $0x48] sm:$0xff]
  %v1178 = vld [vmem:[%s8 + $0x50] sm:$0xff]
  %v1179 = vld [vmem:[%s8 + $0x58] sm:$0xff]
  %v1180 = vld [vmem:[%s8 + $0x60] sm:$0xff]
  %v1181 = vld [vmem:[%s8 + $0x68] sm:$0xff]
  %v1182 = vld [vmem:[%s8 + $0x70] sm:$0xff]
  %v1183 = vld [vmem:[%s8 + $0x78] sm:$0xff]
  %v1184 = vld [vmem:[%s8 + $0x80] sm:$0xff]
  %v1185 = vld [vmem:[%s8 + $0x88] sm:$0xff]
  %v1186 = vld [vmem:[%s8 + $0x90] sm:$0xff]
  %v1187 = vld [vmem:[%s8 + $0x98] sm:$0xff]
  %v1188 = vld [vmem:[%s8 + $0xa0] sm:$0xff]
  %v1189 = vld [vmem:[%s8 + $0xa8] sm:$0xff]
  %v1190 = vld [vmem:[%s8 + $0xb0] sm:$0xff]
  %v1191 = vld [vmem:[%s8 + $0xb8] sm:$0xff]
  %v1192 = vld [vmem:[%s8 + $0xc0] sm:$0xff]
  %v1193 = vld [vmem:[%s8 + $0xc8] sm:$0xff]
  %v1194 = vld [vmem:[%s8 + $0xd0] sm:$0xff]
  %v1195 = vld [vmem:[%s8 + $0xd8] sm:$0xff]
  %v1196 = vld [vmem:[%s8 + $0xe0] sm:$0xff]
  %v1197 = vld [vmem:[%s8 + $0xe8] sm:$0xff]
  %v1198 = vld [vmem:[%s8 + $0xf0] sm:$0xff]
  %v1199 = vld [vmem:[%s8 + $0xf8] sm:$0xff]
  %v1200 = vld [vmem:[%s9 + $0x2] sm:$0x1]
  %v1201 = vlaneseq
  %v1202 = vshrl.u32 %v1201, 7
  %v1203 = vsub.s32 0, %v1202
  %v1204 = vrot.slane %v1200, %v1203
  %1205 = vmatprep.subr.mxu0 0.0
  %1206 = vmatpush1.msra.mxu0 %v1168
  %1207 = vmatprep.subr.mxu0 0.0
  %1208 = vmatpush1.msra.mxu0 %v1169
  %1209 = vmatprep.subr.mxu0 0.0
  %1210 = vmatpush1.msra.mxu0 %v1170
  %1211 = vmatprep.subr.mxu0 0.0
  %1212 = vmatpush1.msra.mxu0 %v1171
  %1213 = vmatprep.subr.mxu0 0.0
  %1214 = vmatpush1.msra.mxu0 %v1172
  %1215 = vmatprep.subr.mxu0 0.0
  %1216 = vmatpush1.msra.mxu0 %v1173
  %1217 = vmatprep.subr.mxu0 0.0
  %1218 = vmatpush1.msra.mxu0 %v1174
  %1219 = vmatprep.subr.mxu0 0.0
  %1220 = vmatpush1.msra.mxu0 %v1175
  %1221 = vmatprep.subr.mxu0 0.0
  %1222 = vmatpush1.msra.mxu0 %v1176
  %1223 = vmatprep.subr.mxu0 0.0
  %1224 = vmatpush1.msra.mxu0 %v1177
  %1225 = vmatprep.subr.mxu0 0.0
  %1226 = vmatpush1.msra.mxu0 %v1178
  %1227 = vmatprep.subr.mxu0 0.0
  %1228 = vmatpush1.msra.mxu0 %v1179
  %1229 = vmatprep.subr.mxu0 0.0
  %1230 = vmatpush1.msra.mxu0 %v1180
  %1231 = vmatprep.subr.mxu0 0.0
  %1232 = vmatpush1.msra.mxu0 %v1181
  %1233 = vmatprep.subr.mxu0 0.0
  %1234 = vmatpush1.msra.mxu0 %v1182
  %1235 = vmatprep.subr.mxu0 0.0
  %1236 = vmatpush1.msra.mxu0 %v1183
  %1237 = vmatprep.subr.mxu0 0.0
  %1238 = vmatpush1.msra.mxu0 %v1184
  %1239 = vmatprep.subr.mxu0 0.0
  %1240 = vmatpush1.msra.mxu0 %v1185
  %1241 = vmatprep.subr.mxu0 0.0
  %1242 = vmatpush1.msra.mxu0 %v1186
  %1243 = vmatprep.subr.mxu0 0.0
  %1244 = vmatpush1.msra.mxu0 %v1187
  %1245 = vmatprep.subr.mxu0 0.0
  %1246 = vmatpush1.msra.mxu0 %v1188
  %1247 = vmatprep.subr.mxu0 0.0
  %1248 = vmatpush1.msra.mxu0 %v1189
  %1249 = vmatprep.subr.mxu0 0.0
  %1250 = vmatpush1.msra.mxu0 %v1190
  %1251 = vmatprep.subr.mxu0 0.0
  %1252 = vmatpush1.msra.mxu0 %v1191
  %1253 = vmatprep.subr.mxu0 0.0
  %1254 = vmatpush1.msra.mxu0 %v1192
  %1255 = vmatprep.subr.mxu0 0.0
  %1256 = vmatpush1.msra.mxu0 %v1193
  %1257 = vmatprep.subr.mxu0 0.0
  %1258 = vmatpush1.msra.mxu0 %v1194
  %1259 = vmatprep.subr.mxu0 0.0
  %1260 = vmatpush1.msra.mxu0 %v1195
  %1261 = vmatprep.subr.mxu0 0.0
  %1262 = vmatpush1.msra.mxu0 %v1196
  %1263 = vmatprep.subr.mxu0 0.0
  %1264 = vmatpush1.msra.mxu0 %v1197
  %1265 = vmatprep.subr.mxu0 0.0
  %1266 = vmatpush1.msra.mxu0 %v1198
  %1267 = vmatprep.subr.mxu0 0.0
  %1268 = vmatpush1.msra.mxu0 %v1199
  %1269 = vmatprep.mubr.f32.mxu0 %v1167
  %1270 = vmatmul.mubr.f32.gmra.mrb[0].mxu0 %v1166
  %v1271 = vpop.f32.mrb[0].mxu0
  %v1272 = vadd.f32 %v1204, %v1271
  %v1273 = vpop.f32.mrb[0].mxu0
  %1274 = vdwg.mxu0
  %vm1275 = vcmp.gt.f32.partialorder %v1272, 0.0
  %v1276 = vmul.f32 %v1272, 0.2
  %v1277 = vsel %vm1275, %v1272, %v1276
  %v1278 = vld [vmem:[%s9 + $0x3] sm:$0x1]
  %v1279 = vlaneseq
  %v1280 = vshrl.u32 %v1279, 7
  %v1281 = vsub.s32 0, %v1280
  %v1282 = vrot.slane %v1278, %v1281
  %v1283 = vmul.f32 %v1277, %v1282
  %v1284 = vsel %vm185, %v1283, 0.0
  %1285 = vadd.xlane.f32.xlu0 %v1284
  %v1286 = vpop.xlane.xlu0 %1285
  %v1287 = vadd.f32 %v1286, %v1282
  %v1288 = vxor.u32 %v1287, 2147483648
  %v1289 = vmul.f32 %v1288, 1.442695
  %v1290 = vpow.pop %v1289
  %v1291 = vadd.f32 %v1290, 1.0
  %v1292 = vrcp.pop %v1291
  %v1293 = vmul.f32 1.0, %v1292
  %1295 = vrot.lane.b32.xlu0 %v1293, 96
  %v1296 = vpop.permute.xlu0 %1295
  %vm1298 = vcmask 7168
  %1299 = vst.msk [vmem:[%s10] sm:$0xff] %vm1298, %v1296
  // Predicated region
  $region42: #{discriminator_forward.1} parent=0 // pred_check
    _
  $region43: #{discriminator_forward.1} parent=0 // pred_check_branch
    %1301 = sbr.rel (0) target = $region45
  $region44: #{discriminator_forward.1} parent=0 // pred_region
    _
  $region45: #{discriminator_forward.1} parent=0 // pred_fallthru
    _
  // Predicated region
  $region46: #{discriminator_forward.1} parent=0 // pred_check
    _
  $region47: #{discriminator_forward.1} parent=0 // pred_check_branch
    %1303 = sbr.rel (0) target = $region49
  $region48: #{discriminator_forward.1} parent=0 // pred_region
    _
  $region49: #{discriminator_forward.1} parent=0 // pred_fallthru
    _

</llo_original>
